<compile_context>
chip_gen: v5e
topology: v5e:2x2
jax: 0.10.0
libtpu: 0.0.40
codegen_flags: <defaults>
</compile_context>

<pallas_src>
import functools
import math

import jax
import jax.numpy as jnp
from jax.experimental import pallas as pl
from jax.experimental.pallas import tpu as pltpu

VMEM = pltpu.MemorySpace.VMEM


def _round_up(x, m):
    return ((x + m - 1) // m) * m


# ----------------------------- Pallas kernels -----------------------------

def _matmul_bias_kernel(x_ref, w_ref, b_ref, o_ref):
    # x: [M, K] @ w: [K, N] + b: [1, N] -> o: [M, N]
    o_ref[...] = (
        jnp.dot(x_ref[...], w_ref[...], preferred_element_type=jnp.float32)
        + b_ref[...]
    )


def _attn_combine_kernel(alpha_ref, q_ref, s_ref, kw_ref, v_ref, dst_ref,
                         o_ref, m_sc, l_sc, acc_sc):
    """Per-destination masked-softmax attention + alpha-gated combine.

    grid = (num_node_tiles ["parallel"], num_edge_tiles ["arbitrary"])
      alpha_ref: [1, 1]        raw alpha parameter
      q_ref    : [n_tile, D]   Q rows of the current destination-node tile
      s_ref    : [n_tile, D]   W_S rows of the current destination-node tile
      kw_ref   : [e_tile, D]   K[src[e]] * rel_w[etype[e]] of the current edge tile
      v_ref    : [e_tile, D]   V[src[e]] of the current edge tile
      dst_ref  : [1, e_tile]   destination node id of each edge (-1 for padding)
      o_ref    : [n_tile, D]   sigmoid(alpha)*W_S + (1-sigmoid(alpha))*attention
    """
    j = pl.program_id(1)

    @pl.when(j == 0)
    def _init():
        m_sc[...] = jnp.full_like(m_sc, -1e30)
        l_sc[...] = jnp.zeros_like(l_sc)
        acc_sc[...] = jnp.zeros_like(acc_sc)

    n_tile = q_ref.shape[0]
    e_tile = kw_ref.shape[0]

    # logits[n, e] = sum_d Q[n, d] * K[src[e], d] * W[etype[e], d]  (MXU matmul;
    # the Q[dst[e]] gather is implicit in the row index of the destination tile).
    scores = jax.lax.dot_general(
        q_ref[...], kw_ref[...],
        dimension_numbers=(((1,), (1,)), ((), ())),
        preferred_element_type=jnp.float32)                          # [n_tile, e_tile]

    # dst-incidence mask built in-register (no dense [N, E] adjacency in HBM).
    row = (jax.lax.broadcasted_iota(jnp.int32, (n_tile, e_tile), 0)
           + pl.program_id(0) * n_tile)
    logits = jnp.where(dst_ref[...] == row, scores, -1e30)

    # online (flash-style) softmax accumulation across edge tiles
    m_new = jnp.maximum(m_sc[...], jnp.max(logits, axis=1, keepdims=True))
    corr = jnp.exp(m_sc[...] - m_new)
    p = jnp.exp(logits - m_new)
    l_sc[...] = corr * l_sc[...] + jnp.sum(p, axis=1, keepdims=True)
    acc_sc[...] = corr * acc_sc[...] + jnp.dot(
        p, v_ref[...], preferred_element_type=jnp.float32)
    m_sc[...] = m_new

    @pl.when(j == pl.num_programs(1) - 1)
    def _finalize():
        final = acc_sc[...] * pl.reciprocal(l_sc[...], approx=True)
        a = jax.nn.sigmoid(alpha_ref[...])                           # (1, 1)
        o_ref[...] = a * s_ref[...] + (1.0 - a) * final


def _bn_tanh_kernel(x_ref, gamma_ref, beta_ref, o_ref):
    # BatchNorm1d with per-call batch statistics (biased variance), eps=1e-5, then tanh.
    x = x_ref[...]
    mean = jnp.mean(x, axis=0, keepdims=True)
    var = jnp.mean((x - mean) ** 2, axis=0, keepdims=True)
    normed = (x - mean) * jax.lax.rsqrt(var + 1e-5)
    o_ref[...] = jnp.tanh(normed * gamma_ref[...] + beta_ref[...])


# ----------------------------- pallas_call wrappers -----------------------------

def _fused_projection(x_pad, w_fused, b_fused, n_tile):
    n_pad, in_dim = x_pad.shape
    four_d = w_fused.shape[1]
    return pl.pallas_call(
        _matmul_bias_kernel,
        out_shape=jax.ShapeDtypeStruct((n_pad, four_d), jnp.float32),
        grid_spec=pltpu.PrefetchScalarGridSpec(
            num_scalar_prefetch=0,
            grid=(n_pad // n_tile,),
            in_specs=[
                pl.BlockSpec((n_tile, in_dim), lambda i: (i, 0)),
                pl.BlockSpec((in_dim, four_d), lambda i: (0, 0)),
                pl.BlockSpec((1, four_d), lambda i: (0, 0)),
            ],
            out_specs=pl.BlockSpec((n_tile, four_d), lambda i: (i, 0)),
        ),
        compiler_params=pltpu.CompilerParams(dimension_semantics=("parallel",)),
    )(x_pad, w_fused, b_fused.reshape(1, four_d))


def _small_linear(x, w, b):
    m = x.shape[0]
    n = w.shape[1]
    return pl.pallas_call(
        _matmul_bias_kernel,
        out_shape=jax.ShapeDtypeStruct((m, n), jnp.float32),
        in_specs=[pl.BlockSpec(memory_space=VMEM)] * 3,
        out_specs=pl.BlockSpec(memory_space=VMEM),
    )(x, w, b.reshape(1, n))


# ----------------------------- parameters -----------------------------

def init_params(key, in_dim, out_dim, num_rels, num_bases):
    ks = jax.random.split(key, 8)

    def lin_init(k, fan_in, fan_out):
        kw, kb = jax.random.split(k)
        bound = 1.0 / math.sqrt(fan_in)
        w = jax.random.uniform(kw, (fan_in, fan_out), jnp.float32, -bound, bound)
        b = jax.random.uniform(kb, (fan_out,), jnp.float32, -bound, bound)
        return w, b

    def xavier_normal(k, shape):
        std = math.sqrt(2.0 / (shape[0] + shape[1]))
        return std * jax.random.normal(k, shape, jnp.float32)

    p = {}
    p["w_s"], p["b_s"] = lin_init(ks[0], in_dim, out_dim)
    p["w_k"], p["b_k"] = lin_init(ks[1], in_dim, out_dim)
    p["w_q"], p["b_q"] = lin_init(ks[2], in_dim, out_dim)
    p["w_v"], p["b_v"] = lin_init(ks[3], in_dim, out_dim)
    p["w_r"], p["b_r"] = lin_init(ks[4], in_dim, out_dim)
    p["relation_att"] = xavier_normal(ks[5], (num_bases, out_dim))
    p["w_comp"] = xavier_normal(ks[6], (num_rels, num_bases))   # num_bases < num_rels
    p["loop_rel"] = xavier_normal(ks[7], (1, in_dim))
    p["alpha"] = jnp.ones((1,), jnp.float32)
    p["bn_gamma"] = jnp.ones((out_dim,), jnp.float32)
    p["bn_beta"] = jnp.zeros((out_dim,), jnp.float32)
    return p


# ----------------------------- forward -----------------------------

def comp_graph_conv_forward(params, n_feats, r_feats, src, dst, etype, edge_norm,
                            *, n_tile=256, e_tile=512):
    # NOTE: g.edata['h'] = r_all[etype] * norm is computed in the torch module but never
    # consumed downstream; it has no effect on the outputs and is omitted here.
    del edge_norm

    N, in_dim = n_feats.shape
    E = src.shape[0]
    D = params["w_s"].shape[1]

    # tile sizes: N-tiles on sublane granularity (8), E-tiles on lane granularity (128)
    n_tile = min(n_tile, _round_up(N, 8))
    e_tile = min(e_tile, _round_up(E, 128))
    assert n_tile % 8 == 0 and e_tile % 128 == 0
    n_pad = _round_up(N, n_tile)
    e_pad = _round_up(E, e_tile)

    # ---- fused K/Q/V/S projection: one MXU matmul instead of four ----
    w_fused = jnp.concatenate(
        [params["w_k"], params["w_q"], params["w_v"], params["w_s"]], axis=1)
    b_fused = jnp.concatenate(
        [params["b_k"], params["b_q"], params["b_v"], params["b_s"]])
    x_pad = jnp.pad(n_feats, ((0, n_pad - N), (0, 0)))
    kqvs = _fused_projection(x_pad, w_fused, b_fused, n_tile)       # [n_pad, 4*D]
    K = kqvs[:, 0 * D:1 * D]
    Q = kqvs[:, 1 * D:2 * D]
    V = kqvs[:, 2 * D:3 * D]
    S = kqvs[:, 3 * D:4 * D]

    # ---- basis-decomposed relation weights (tiny speck -> plain XLA dot) ----
    rel_w = jnp.dot(params["w_comp"], params["relation_att"])        # [R, D]

    # ---- per-edge operands (the Q[dst] gather is implicit in the kernel) ----
    # TODO(synk): these two gathers could also move in-kernel (scalar-prefetched indices);
    # kept in XLA to avoid relying on dynamic-gather lowering.
    src = src.astype(jnp.int32)
    dst = dst.astype(jnp.int32)
    etype = etype.astype(jnp.int32)
    kw = jnp.take(K, src, axis=0) * jnp.take(rel_w, etype, axis=0)   # [E, D]
    vs = jnp.take(V, src, axis=0)                                    # [E, D]
    kw = jnp.pad(kw, ((0, e_pad - E), (0, 0)))
    vs = jnp.pad(vs, ((0, e_pad - E), (0, 0)))
    dst_pad = jnp.pad(dst, (0, e_pad - E), constant_values=-1).reshape(1, e_pad)

    # ---- attention + per-dst softmax + alpha-gated combine (tiled Pallas kernel) ----
    grid = (n_pad // n_tile, e_pad // e_tile)
    pre = pl.pallas_call(
        _attn_combine_kernel,
        out_shape=jax.ShapeDtypeStruct((n_pad, D), jnp.float32),
        grid_spec=pltpu.PrefetchScalarGridSpec(
            num_scalar_prefetch=0,
            grid=grid,
            in_specs=[
                pl.BlockSpec((1, 1), lambda i, j: (0, 0)),           # alpha
                pl.BlockSpec((n_tile, D), lambda i, j: (i, 0)),      # Q (dst-node tile)
                pl.BlockSpec((n_tile, D), lambda i, j: (i, 0)),      # W_S output tile
                pl.BlockSpec((e_tile, D), lambda i, j: (j, 0)),      # K[src]*rel_w[etype]
                pl.BlockSpec((e_tile, D), lambda i, j: (j, 0)),      # V[src]
                pl.BlockSpec((1, e_tile), lambda i, j: (0, j)),      # dst ids
            ],
            out_specs=pl.BlockSpec((n_tile, D), lambda i, j: (i, 0)),
            scratch_shapes=[
                pltpu.VMEM((n_tile, 1), jnp.float32),                # running max
                pltpu.VMEM((n_tile, 1), jnp.float32),                # running denom
                pltpu.VMEM((n_tile, D), jnp.float32),                # running numerator
            ]),
        compiler_params=pltpu.CompilerParams(
            dimension_semantics=("parallel", "arbitrary")),
    )(params["alpha"].reshape(1, 1), Q, S, kw, vs, dst_pad)

    # ---- BatchNorm1d (full-batch statistics) + tanh ----
    # TODO(synk): for very large N this should become a tiled two-pass kernel.
    n_out = pl.pallas_call(
        _bn_tanh_kernel,
        out_shape=jax.ShapeDtypeStruct((N, D), jnp.float32),
        in_specs=[pl.BlockSpec(memory_space=VMEM)] * 3,
        out_specs=pl.BlockSpec(memory_space=VMEM),
    )(pre[:N], params["bn_gamma"].reshape(1, D), params["bn_beta"].reshape(1, D))

    # ---- relation outputs: W_R(cat(r_feats, loop_rel))[:-1] ----
    r_all = jnp.concatenate([r_feats, params["loop_rel"]], axis=0)   # [R+1, in_dim]
    r_out = _small_linear(r_all, params["w_r"], params["b_r"])[:-1]
    return n_out, r_out


# ----------------------------- pure-JAX reference -----------------------------

def reference_forward(params, n_feats, r_feats, src, dst, etype):
    N = n_feats.shape[0]
    r_all = jnp.concatenate([r_feats, params["loop_rel"]], axis=0)
    rel_w = jnp.dot(params["w_comp"], params["relation_att"])
    K = n_feats @ params["w_k"] + params["b_k"]
    Q = n_feats @ params["w_q"] + params["b_q"]
    V = n_feats @ params["w_v"] + params["b_v"]
    S = n_feats @ params["w_s"] + params["b_s"]
    att = jnp.sum(K[src] * rel_w[etype] * Q[dst], axis=-1)           # [E]
    adj = dst[None, :] == jnp.arange(N, dtype=dst.dtype)[:, None]    # [N, E]
    logits = jnp.where(adj, att[None, :], -1e30)
    logits = logits - jnp.max(logits, axis=1, keepdims=True)
    p = jnp.exp(logits)
    probs = p / jnp.sum(p, axis=1, keepdims=True)
    final = probs @ V[src]
    a = jax.nn.sigmoid(params["alpha"][0])
    pre = a * S + (1.0 - a) * final
    mean = jnp.mean(pre, axis=0, keepdims=True)
    var = jnp.mean((pre - mean) ** 2, axis=0, keepdims=True)
    n_out = jnp.tanh((pre - mean) * jax.lax.rsqrt(var + 1e-5)
                     * params["bn_gamma"][None, :] + params["bn_beta"][None, :])
    r_out = (r_all @ params["w_r"] + params["b_r"])[:-1]
    return n_out, r_out


# ----------------------------- example run -----------------------------

if __name__ == "__main__":
    key = jax.random.PRNGKey(0)
    N, E = 24, 200
    in_dim, out_dim = 32, 40          # n_heads=5 -> d_k=8 (d_k unused in forward)
    num_rels, num_bases = 6, 4

    k_par, k_x, k_r, k_src, k_dst, k_et = jax.random.split(key, 6)
    params = init_params(k_par, in_dim, out_dim, num_rels, num_bases)

    n_feats = jax.random.normal(k_x, (N, in_dim), jnp.float32)
    r_feats = jax.random.normal(k_r, (num_rels, in_dim), jnp.float32)
    src = jax.random.randint(k_src, (E,), 0, N, dtype=jnp.int32)
    # guarantee every node has >= 1 incoming edge so every per-dst softmax is defined
    dst = jnp.concatenate([
        jnp.arange(N, dtype=jnp.int32),
        jax.random.randint(k_dst, (E - N,), 0, N, dtype=jnp.int32),
    ])
    etype = jax.random.randint(k_et, (E,), 0, num_rels, dtype=jnp.int32)
    edge_norm = jnp.ones((E, 1), jnp.float32)

    # small tiles here so the demo exercises multi-tile N ("parallel") and E ("arbitrary") axes
    fwd = jax.jit(functools.partial(comp_graph_conv_forward, n_tile=8, e_tile=128))
    n_out, r_out = fwd(params, n_feats, r_feats, src, dst, etype, edge_norm)
    jax.block_until_ready((n_out, r_out))

    assert n_out.shape == (N, out_dim) and n_out.dtype == jnp.float32
    assert r_out.shape == (num_rels, out_dim) and r_out.dtype == jnp.float32
    assert bool(jnp.all(jnp.isfinite(n_out))) and bool(jnp.all(jnp.isfinite(r_out)))

    # numerical check against a pure-JAX reference of the torch forward
    n_ref, r_ref = reference_forward(params, n_feats, r_feats, src, dst, etype)
    assert float(jnp.max(jnp.abs(n_out - n_ref))) < 2e-2
    assert float(jnp.max(jnp.abs(r_out - r_ref))) < 5e-3

    print("KERNEL_OK")
</pallas_src>

<mosaic_0001>
module attributes {stable_mosaic.version = 11 : i64} {
  func.func @_matmul_bias_kernel(%arg0: i32, %arg1: memref<8x32xf32, #tpu.memory_space<vmem>>, %arg2: memref<32x160xf32, #tpu.memory_space<vmem>>, %arg3: memref<1x160xf32, #tpu.memory_space<vmem>>, %arg4: memref<8x160xf32, #tpu.memory_space<vmem>>) attributes {dimension_semantics = [#tpu.dimension_semantics<parallel>], iteration_bounds = array<i64: 3>, scalar_prefetch = 0 : i64, scratch_operands = 0 : i64, tpu.core_type = #tpu.core_type<tc>, window_params = [{transform_indices = @transform_0, window_bounds = array<i64: 8, 32>}, {pipeline_mode = #tpu.pipeline_mode<synchronous>, transform_indices = @transform_1, window_bounds = array<i64: 32, 160>}, {pipeline_mode = #tpu.pipeline_mode<synchronous>, transform_indices = @transform_2, window_bounds = array<i64: 1, 160>}, {transform_indices = @transform_3, window_bounds = array<i64: 8, 160>}]} {
    %c0 = arith.constant 0 : index
    %c0_0 = arith.constant 0 : index
    %0 = vector.load %arg1[%c0, %c0_0] : memref<8x32xf32, #tpu.memory_space<vmem>>, vector<8x32xf32>
    %c0_1 = arith.constant 0 : index
    %c0_2 = arith.constant 0 : index
    %1 = vector.load %arg2[%c0_1, %c0_2] : memref<32x160xf32, #tpu.memory_space<vmem>>, vector<32x160xf32>
    %cst = arith.constant dense<0.000000e+00> : vector<8x160xf32>
    %2 = tpu.matmul %0, %1, %cst {dimension_numbers = #tpu.dot_dimension_numbers<[1], [0], [0], [1], [0, 0, 1, 1], [], []>} : vector<8x32xf32>, vector<32x160xf32>, vector<8x160xf32> -> vector<8x160xf32>
    %c0_3 = arith.constant 0 : index
    %c0_4 = arith.constant 0 : index
    %3 = vector.load %arg3[%c0_3, %c0_4] : memref<1x160xf32, #tpu.memory_space<vmem>>, vector<1x160xf32>
    %4 = vector.broadcast %3 : vector<1x160xf32> to vector<8x160xf32>
    %5 = arith.addf %2, %4 : vector<8x160xf32>
    %c0_5 = arith.constant 0 : index
    %c0_6 = arith.constant 0 : index
    %6 = vector.load %arg4[%c0_5, %c0_6] : memref<8x160xf32, #tpu.memory_space<vmem>>, vector<8x160xf32>
    tpu.vector_store %arg4[%c0_5, %c0_6], %5 {strides = array<i32>} : memref<8x160xf32, #tpu.memory_space<vmem>>, vector<8x160xf32>,
    return
  }
  func.func @transform_0(%arg0: i32) -> (i32, i32) {
    %c0_i32 = arith.constant 0 : i32
    %c0_i32_0 = arith.constant 0 : i32
    return %arg0, %c0_i32 : i32, i32
  }
  func.func @transform_1(%arg0: i32) -> (i32, i32) {
    %c0_i32 = arith.constant 0 : i32
    %c0_i32_0 = arith.constant 0 : i32
    %c0_i32_1 = arith.constant 0 : i32
    return %c0_i32, %c0_i32_0 : i32, i32
  }
  func.func @transform_2(%arg0: i32) -> (i32, i32) {
    %c0_i32 = arith.constant 0 : i32
    %c0_i32_0 = arith.constant 0 : i32
    %c0_i32_1 = arith.constant 0 : i32
    return %c0_i32, %c0_i32_0 : i32, i32
  }
  func.func @transform_3(%arg0: i32) -> (i32, i32) {
    %c0_i32 = arith.constant 0 : i32
    %c0_i32_0 = arith.constant 0 : i32
    return %arg0, %c0_i32 : i32, i32
  }
}

module attributes {stable_mosaic.version = 11 : i64} {
  func.func @_bn_tanh_kernel(%arg0: memref<24x40xf32, #tpu.memory_space<vmem>>, %arg1: memref<1x40xf32, #tpu.memory_space<vmem>>, %arg2: memref<1x40xf32, #tpu.memory_space<vmem>>, %arg3: memref<24x40xf32, #tpu.memory_space<vmem>>) attributes {dimension_semantics = [], scalar_prefetch = 0 : i64, scratch_operands = 0 : i64, tpu.core_type = #tpu.core_type<tc>} {
    %c0 = arith.constant 0 : index
    %c0_0 = arith.constant 0 : index
    %0 = vector.load %arg0[%c0, %c0_0] : memref<24x40xf32, #tpu.memory_space<vmem>>, vector<24x40xf32>
    %cst = arith.constant dense<0.000000e+00> : vector<40xf32>
    %1 = vector.multi_reduction <add>, %0, %cst [0] : vector<24x40xf32> to vector<40xf32>
    %2 = vector.shape_cast %1 : vector<40xf32> to vector<1x40xf32>
    %cst_1 = arith.constant 2.400000e+01 : f32
    %3 = vector.broadcast %cst_1 : f32 to vector<1x40xf32>
    %4 = arith.divf %2, %3 : vector<1x40xf32>
    %5 = vector.broadcast %4 : vector<1x40xf32> to vector<24x40xf32>
    %6 = arith.subf %0, %5 : vector<24x40xf32>
    %7 = arith.mulf %6, %6 : vector<24x40xf32>
    %cst_2 = arith.constant dense<0.000000e+00> : vector<40xf32>
    %8 = vector.multi_reduction <add>, %7, %cst_2 [0] : vector<24x40xf32> to vector<40xf32>
    %9 = vector.shape_cast %8 : vector<40xf32> to vector<1x40xf32>
    %cst_3 = arith.constant 2.400000e+01 : f32
    %10 = vector.broadcast %cst_3 : f32 to vector<1x40xf32>
    %11 = arith.divf %9, %10 : vector<1x40xf32>
    %12 = vector.broadcast %4 : vector<1x40xf32> to vector<24x40xf32>
    %13 = arith.subf %0, %12 : vector<24x40xf32>
    %cst_4 = arith.constant 9.99999974E-6 : f32
    %14 = vector.broadcast %cst_4 : f32 to vector<1x40xf32>
    %15 = arith.addf %11, %14 : vector<1x40xf32>
    %16 = math.rsqrt %15 : vector<1x40xf32>
    %17 = vector.broadcast %16 : vector<1x40xf32> to vector<24x40xf32>
    %18 = arith.mulf %13, %17 : vector<24x40xf32>
    %c0_5 = arith.constant 0 : index
    %c0_6 = arith.constant 0 : index
    %19 = vector.load %arg1[%c0_5, %c0_6] : memref<1x40xf32, #tpu.memory_space<vmem>>, vector<1x40xf32>
    %20 = vector.broadcast %19 : vector<1x40xf32> to vector<24x40xf32>
    %21 = arith.mulf %18, %20 : vector<24x40xf32>
    %c0_7 = arith.constant 0 : index
    %c0_8 = arith.constant 0 : index
    %22 = vector.load %arg2[%c0_7, %c0_8] : memref<1x40xf32, #tpu.memory_space<vmem>>, vector<1x40xf32>
    %23 = vector.broadcast %22 : vector<1x40xf32> to vector<24x40xf32>
    %24 = arith.addf %21, %23 : vector<24x40xf32>
    %25 = math.tanh %24 : vector<24x40xf32>
    %c0_9 = arith.constant 0 : index
    %c0_10 = arith.constant 0 : index
    %26 = vector.load %arg3[%c0_9, %c0_10] : memref<24x40xf32, #tpu.memory_space<vmem>>, vector<24x40xf32>
    tpu.vector_store %arg3[%c0_9, %c0_10], %25 {strides = array<i32>} : memref<24x40xf32, #tpu.memory_space<vmem>>, vector<24x40xf32>,
    return
  }
}

module attributes {stable_mosaic.version = 11 : i64} {
  func.func @_attn_combine_kernel(%arg0: i32, %arg1: i32, %arg2: memref<1x1xf32, #tpu.memory_space<vmem>>, %arg3: memref<8x40xf32, #tpu.memory_space<vmem>>, %arg4: memref<8x40xf32, #tpu.memory_space<vmem>>, %arg5: memref<128x40xf32, #tpu.memory_space<vmem>>, %arg6: memref<128x40xf32, #tpu.memory_space<vmem>>, %arg7: memref<1x128xi32, #tpu.memory_space<vmem>>, %arg8: memref<8x40xf32, #tpu.memory_space<vmem>>, %arg9: memref<8x1xf32, #tpu.memory_space<vmem>>, %arg10: memref<8x1xf32, #tpu.memory_space<vmem>>, %arg11: memref<8x40xf32, #tpu.memory_space<vmem>>) attributes {dimension_semantics = [#tpu.dimension_semantics<parallel>, #tpu.dimension_semantics<arbitrary>], iteration_bounds = array<i64: 3, 2>, scalar_prefetch = 0 : i64, scratch_operands = 3 : i64, tpu.core_type = #tpu.core_type<tc>, window_params = [{pipeline_mode = #tpu.pipeline_mode<synchronous>, transform_indices = @transform_0, window_bounds = array<i64: 1, 1>}, {transform_indices = @transform_1, window_bounds = array<i64: 8, 40>}, {transform_indices = @transform_2, window_bounds = array<i64: 8, 40>}, {transform_indices = @transform_3, window_bounds = array<i64: 128, 40>}, {transform_indices = @transform_4, window_bounds = array<i64: 128, 40>}, {transform_indices = @transform_5, window_bounds = array<i64: 1, 128>}, {transform_indices = @transform_6, window_bounds = array<i64: 8, 40>}]} {
    %c0_i32 = arith.constant 0 : i32
    %0 = arith.cmpi eq, %arg1, %c0_i32 : i32
    %1 = arith.extui %0 : i1 to i32
    %c0_i32_0 = arith.constant 0 : i32
    %2 = arith.cmpi ne, %1, %c0_i32_0 : i32
    scf.if %2 {
      %cst_27 = arith.constant -1.000000e+30 : f32
      %42 = vector.broadcast %cst_27 : f32 to vector<8x1xf32>
      %c0_28 = arith.constant 0 : index
      %c0_29 = arith.constant 0 : index
      %43 = vector.load %arg9[%c0_28, %c0_29] : memref<8x1xf32, #tpu.memory_space<vmem>>, vector<8x1xf32>
      tpu.vector_store %arg9[%c0_28, %c0_29], %42 {strides = array<i32>} : memref<8x1xf32, #tpu.memory_space<vmem>>, vector<8x1xf32>,
      %cst_30 = arith.constant 0.000000e+00 : f32
      %44 = vector.broadcast %cst_30 : f32 to vector<8x1xf32>
      %c0_31 = arith.constant 0 : index
      %c0_32 = arith.constant 0 : index
      %45 = vector.load %arg10[%c0_31, %c0_32] : memref<8x1xf32, #tpu.memory_space<vmem>>, vector<8x1xf32>
      tpu.vector_store %arg10[%c0_31, %c0_32], %44 {strides = array<i32>} : memref<8x1xf32, #tpu.memory_space<vmem>>, vector<8x1xf32>,
      %cst_33 = arith.constant 0.000000e+00 : f32
      %46 = vector.broadcast %cst_33 : f32 to vector<8x40xf32>
      %c0_34 = arith.constant 0 : index
      %c0_35 = arith.constant 0 : index
      %47 = vector.load %arg11[%c0_34, %c0_35] : memref<8x40xf32, #tpu.memory_space<vmem>>, vector<8x40xf32>
      tpu.vector_store %arg11[%c0_34, %c0_35], %46 {strides = array<i32>} : memref<8x40xf32, #tpu.memory_space<vmem>>, vector<8x40xf32>,
    } else {
    }
    %c0 = arith.constant 0 : index
    %c0_1 = arith.constant 0 : index
    %3 = vector.load %arg3[%c0, %c0_1] : memref<8x40xf32, #tpu.memory_space<vmem>>, vector<8x40xf32>
    %c0_2 = arith.constant 0 : index
    %c0_3 = arith.constant 0 : index
    %4 = vector.load %arg5[%c0_2, %c0_3] : memref<128x40xf32, #tpu.memory_space<vmem>>, vector<128x40xf32>
    %cst = arith.constant dense<0.000000e+00> : vector<8x128xf32>
    %5 = tpu.matmul %3, %4, %cst {dimension_numbers = #tpu.dot_dimension_numbers<[1], [1], [0], [0], [0, 0, 1, 0], [], []>} : vector<8x40xf32>, vector<128x40xf32>, vector<8x128xf32> -> vector<8x128xf32>
    %6 = tpu.iota {dimensions = array<i32: 0>} : vector<8x128xi32>
    %c8_i32 = arith.constant 8 : i32
    %7 = arith.muli %arg0, %c8_i32 : i32
    %8 = vector.broadcast %7 : i32 to vector<8x128xi32>
    %9 = arith.addi %6, %8 : vector<8x128xi32>
    %c0_4 = arith.constant 0 : index
    %c0_5 = arith.constant 0 : index
    %10 = vector.load %arg7[%c0_4, %c0_5] : memref<1x128xi32, #tpu.memory_space<vmem>>, vector<1x128xi32>
    %11 = vector.broadcast %10 : vector<1x128xi32> to vector<8x128xi32>
    %12 = arith.cmpi eq, %11, %9 : vector<8x128xi32>
    %cst_6 = arith.constant -1.000000e+30 : f32
    %13 = vector.broadcast %cst_6 : f32 to vector<8x128xf32>
    %14 = arith.select %12, %5, %13 : vector<8x128xi1>, vector<8x128xf32>
    %c0_7 = arith.constant 0 : index
    %c0_8 = arith.constant 0 : index
    %15 = vector.load %arg9[%c0_7, %c0_8] : memref<8x1xf32, #tpu.memory_space<vmem>>, vector<8x1xf32>
    %cst_9 = arith.constant dense<0xFF800000> : vector<8xf32>
    %16 = vector.multi_reduction <maximumf>, %14, %cst_9 [1] : vector<8x128xf32> to vector<8xf32>
    %17 = vector.shape_cast %16 : vector<8xf32> to vector<8x1xf32>
    %18 = arith.maximumf %15, %17 : vector<8x1xf32>
    %c0_10 = arith.constant 0 : index
    %c0_11 = arith.constant 0 : index
    %19 = vector.load %arg9[%c0_10, %c0_11] : memref<8x1xf32, #tpu.memory_space<vmem>>, vector<8x1xf32>
    %20 = arith.subf %19, %18 : vector<8x1xf32>
    %21 = math.exp %20 : vector<8x1xf32>
    %22 = vector.broadcast %18 : vector<8x1xf32> to vector<8x128xf32>
    %23 = arith.subf %14, %22 : vector<8x128xf32>
    %24 = math.exp %23 : vector<8x128xf32>
    %c0_12 = arith.constant 0 : index
    %c0_13 = arith.constant 0 : index
    %25 = vector.load %arg10[%c0_12, %c0_13] : memref<8x1xf32, #tpu.memory_space<vmem>>, vector<8x1xf32>
    %26 = arith.mulf %21, %25 : vector<8x1xf32>
    %cst_14 = arith.constant dense<0.000000e+00> : vector<8xf32>
    %27 = vector.multi_reduction <add>, %24, %cst_14 [1] : vector<8x128xf32> to vector<8xf32>
    %28 = vector.shape_cast %27 : vector<8xf32> to vector<8x1xf32>
    %29 = arith.addf %26, %28 : vector<8x1xf32>
    %c0_15 = arith.constant 0 : index
    %c0_16 = arith.constant 0 : index
    %30 = vector.load %arg10[%c0_15, %c0_16] : memref<8x1xf32, #tpu.memory_space<vmem>>, vector<8x1xf32>
    tpu.vector_store %arg10[%c0_15, %c0_16], %29 {strides = array<i32>} : memref<8x1xf32, #tpu.memory_space<vmem>>, vector<8x1xf32>,
    %c0_17 = arith.constant 0 : index
    %c0_18 = arith.constant 0 : index
    %31 = vector.load %arg11[%c0_17, %c0_18] : memref<8x40xf32, #tpu.memory_space<vmem>>, vector<8x40xf32>
    %32 = vector.broadcast %21 : vector<8x1xf32> to vector<8x40xf32>
    %33 = arith.mulf %32, %31 : vector<8x40xf32>
    %c0_19 = arith.constant 0 : index
    %c0_20 = arith.constant 0 : index
    %34 = vector.load %arg6[%c0_19, %c0_20] : memref<128x40xf32, #tpu.memory_space<vmem>>, vector<128x40xf32>
    %cst_21 = arith.constant dense<0.000000e+00> : vector<8x40xf32>
    %35 = tpu.matmul %24, %34, %cst_21 {dimension_numbers = #tpu.dot_dimension_numbers<[1], [0], [0], [1], [0, 0, 1, 1], [], []>} : vector<8x128xf32>, vector<128x40xf32>, vector<8x40xf32> -> vector<8x40xf32>
    %36 = arith.addf %33, %35 : vector<8x40xf32>
    %c0_22 = arith.constant 0 : index
    %c0_23 = arith.constant 0 : index
    %37 = vector.load %arg11[%c0_22, %c0_23] : memref<8x40xf32, #tpu.memory_space<vmem>>, vector<8x40xf32>
    tpu.vector_store %arg11[%c0_22, %c0_23], %36 {strides = array<i32>} : memref<8x40xf32, #tpu.memory_space<vmem>>, vector<8x40xf32>,
    %c0_24 = arith.constant 0 : index
    %c0_25 = arith.constant 0 : index
    %38 = vector.load %arg9[%c0_24, %c0_25] : memref<8x1xf32, #tpu.memory_space<vmem>>, vector<8x1xf32>
    tpu.vector_store %arg9[%c0_24, %c0_25], %18 {strides = array<i32>} : memref<8x1xf32, #tpu.memory_space<vmem>>, vector<8x1xf32>,
    %c1_i32 = arith.constant 1 : i32
    %39 = arith.cmpi eq, %arg1, %c1_i32 : i32
    %40 = arith.extui %39 : i1 to i32
    %c0_i32_26 = arith.constant 0 : i32
    %41 = arith.cmpi ne, %40, %c0_i32_26 : i32
    scf.if %41 {
      %c0_27 = arith.constant 0 : index
      %c0_28 = arith.constant 0 : index
      %42 = vector.load %arg11[%c0_27, %c0_28] : memref<8x40xf32, #tpu.memory_space<vmem>>, vector<8x40xf32>
      %c0_29 = arith.constant 0 : index
      %c0_30 = arith.constant 0 : index
      %43 = vector.load %arg10[%c0_29, %c0_30] : memref<8x1xf32, #tpu.memory_space<vmem>>, vector<8x1xf32>
      %44 = tpu.reciprocal %43 {approx = true} : vector<8x1xf32> -> vector<8x1xf32>
      %45 = vector.broadcast %44 : vector<8x1xf32> to vector<8x40xf32>
      %46 = arith.mulf %42, %45 : vector<8x40xf32>
      %c0_31 = arith.constant 0 : index
      %c0_32 = arith.constant 0 : index
      %47 = vector.load %arg2[%c0_31, %c0_32] : memref<1x1xf32, #tpu.memory_space<vmem>>, vector<1x1xf32>
      %48 = arith.negf %47 : vector<1x1xf32>
      %49 = math.exp %48 : vector<1x1xf32>
      %cst_33 = arith.constant 1.000000e+00 : f32
      %50 = vector.broadcast %cst_33 : f32 to vector<1x1xf32>
      %51 = arith.addf %50, %49 : vector<1x1xf32>
      %52 = arith.divf %50, %51 : vector<1x1xf32>
      %c0_34 = arith.constant 0 : index
      %c0_35 = arith.constant 0 : index
      %53 = vector.load %arg4[%c0_34, %c0_35] : memref<8x40xf32, #tpu.memory_space<vmem>>, vector<8x40xf32>
      %54 = vector.broadcast %52 : vector<1x1xf32> to vector<8x40xf32>
      %55 = arith.mulf %54, %53 : vector<8x40xf32>
      %cst_36 = arith.constant 1.000000e+00 : f32
      %56 = vector.broadcast %cst_36 : f32 to vector<1x1xf32>
      %57 = arith.subf %56, %52 : vector<1x1xf32>
      %58 = vector.broadcast %57 : vector<1x1xf32> to vector<8x40xf32>
      %59 = arith.mulf %58, %46 : vector<8x40xf32>
      %60 = arith.addf %55, %59 : vector<8x40xf32>
      %c0_37 = arith.constant 0 : index
      %c0_38 = arith.constant 0 : index
      %61 = vector.load %arg8[%c0_37, %c0_38] : memref<8x40xf32, #tpu.memory_space<vmem>>, vector<8x40xf32>
      tpu.vector_store %arg8[%c0_37, %c0_38], %60 {strides = array<i32>} : memref<8x40xf32, #tpu.memory_space<vmem>>, vector<8x40xf32>,
    } else {
    }
    return
  }
  func.func @transform_0(%arg0: i32, %arg1: i32) -> (i32, i32) {
    %c0_i32 = arith.constant 0 : i32
    %c0_i32_0 = arith.constant 0 : i32
    %c0_i32_1 = arith.constant 0 : i32
    return %c0_i32, %c0_i32_0 : i32, i32
  }
  func.func @transform_1(%arg0: i32, %arg1: i32) -> (i32, i32) {
    %c0_i32 = arith.constant 0 : i32
    %c0_i32_0 = arith.constant 0 : i32
    return %arg0, %c0_i32 : i32, i32
  }
  func.func @transform_2(%arg0: i32, %arg1: i32) -> (i32, i32) {
    %c0_i32 = arith.constant 0 : i32
    %c0_i32_0 = arith.constant 0 : i32
    return %arg0, %c0_i32 : i32, i32
  }
  func.func @transform_3(%arg0: i32, %arg1: i32) -> (i32, i32) {
    %c0_i32 = arith.constant 0 : i32
    %c0_i32_0 = arith.constant 0 : i32
    return %arg1, %c0_i32 : i32, i32
  }
  func.func @transform_4(%arg0: i32, %arg1: i32) -> (i32, i32) {
    %c0_i32 = arith.constant 0 : i32
    %c0_i32_0 = arith.constant 0 : i32
    return %arg1, %c0_i32 : i32, i32
  }
  func.func @transform_5(%arg0: i32, %arg1: i32) -> (i32, i32) {
    %c0_i32 = arith.constant 0 : i32
    %c0_i32_0 = arith.constant 0 : i32
    return %c0_i32, %arg1 : i32, i32
  }
  func.func @transform_6(%arg0: i32, %arg1: i32) -> (i32, i32) {
    %c0_i32 = arith.constant 0 : i32
    %c0_i32_0 = arith.constant 0 : i32
    return %arg0, %c0_i32 : i32, i32
  }
}

module attributes {stable_mosaic.version = 11 : i64} {
  func.func @_matmul_bias_kernel(%arg0: memref<7x32xf32, #tpu.memory_space<vmem>>, %arg1: memref<32x40xf32, #tpu.memory_space<vmem>>, %arg2: memref<1x40xf32, #tpu.memory_space<vmem>>, %arg3: memref<7x40xf32, #tpu.memory_space<vmem>>) attributes {dimension_semantics = [], scalar_prefetch = 0 : i64, scratch_operands = 0 : i64, tpu.core_type = #tpu.core_type<tc>} {
    %c0 = arith.constant 0 : index
    %c0_0 = arith.constant 0 : index
    %0 = vector.load %arg0[%c0, %c0_0] : memref<7x32xf32, #tpu.memory_space<vmem>>, vector<7x32xf32>
    %c0_1 = arith.constant 0 : index
    %c0_2 = arith.constant 0 : index
    %1 = vector.load %arg1[%c0_1, %c0_2] : memref<32x40xf32, #tpu.memory_space<vmem>>, vector<32x40xf32>
    %cst = arith.constant dense<0.000000e+00> : vector<7x40xf32>
    %2 = tpu.matmul %0, %1, %cst {dimension_numbers = #tpu.dot_dimension_numbers<[1], [0], [0], [1], [0, 0, 1, 1], [], []>} : vector<7x32xf32>, vector<32x40xf32>, vector<7x40xf32> -> vector<7x40xf32>
    %c0_3 = arith.constant 0 : index
    %c0_4 = arith.constant 0 : index
    %3 = vector.load %arg2[%c0_3, %c0_4] : memref<1x40xf32, #tpu.memory_space<vmem>>, vector<1x40xf32>
    %4 = vector.broadcast %3 : vector<1x40xf32> to vector<7x40xf32>
    %5 = arith.addf %2, %4 : vector<7x40xf32>
    %c0_5 = arith.constant 0 : index
    %c0_6 = arith.constant 0 : index
    %6 = vector.load %arg3[%c0_5, %c0_6] : memref<7x40xf32, #tpu.memory_space<vmem>>, vector<7x40xf32>
    tpu.vector_store %arg3[%c0_5, %c0_6], %5 {strides = array<i32>} : memref<7x40xf32, #tpu.memory_space<vmem>>, vector<7x40xf32>,
    return
  }
}

</mosaic_0001>

<llo_original>
// kernel: comp_graph_conv_forward.4
$region0: #{comp_graph_conv_forward.4}
  #allocation0 [shape = 'u32[]', space=smem, size = 0x4, offset = 0x4, fixed_abs, tag = 'smem constant byte address 0x4 - core index']
  #allocation1 [shape = 'u32[72,128]{1,0:T(1,128)}', space=vmem, size = 0x9000, scoped, tag = 'internal scratch']
  %s0 = inlined_call_operand.vmem [shape: f32[24,32], index: 0, kind: input, shape index: {}]
  %s1 = inlined_call_operand.vmem [shape: f32[32,160], index: 1, kind: input, shape index: {}]
  %s2 = inlined_call_operand.vmem [shape: f32[1,160], index: 2, kind: input, shape index: {}]
  %s3 = inlined_call_operand.vmem [shape: f32[24,160], index: 3, kind: output, shape index: {}]
  %s4 = sld [smem:[#allocation0]]
  $region45: #{comp_graph_conv_forward.4} parent=0
    _
  %s6 = ssub.s32 1, %s4
  %s7 = scalar_select 0, %s6, %s4
  loop: start=0, step=1, limit=5
  $region2: #{comp_graph_conv_forward.4} parent=0 // loop_pre_header
    _
  $region3: #{comp_graph_conv_forward.4} parent=0 // loop_header
    %s9 = sphi 0, %s13
    %p10 = scmp.ge.s32.totalorder %s9, 5
    %s19 = sphi 0, %s21
    %s22 = sphi 0, %s19
    %s23 = sphi 0, %s22
    %s39 = sphi 0, %s23
    %s43 = sphi 0, %s43
    %s45 = sphi 0, %s43
    %s46 = sphi 0, %s45
    %s60 = sphi 0, %s46
    %s64 = sphi 0, %s64
    %s66 = sphi 0, %s64
    %s67 = sphi 0, %s66
    %s81 = sphi 0, %s67
    %s87 = sphi 0, %s89
    %s90 = sphi 0, %s87
    %s91 = sphi 0, %s90
    %s107 = sphi 0, %s91
  $region4: #{comp_graph_conv_forward.4} parent=0 // loop_header_branch
    %12 = sbr.rel (%p10) target = $region8
  $region5: #{comp_graph_conv_forward.4} parent=0 // loop_body
    %s14 = ssub.s32 %s9, 1
    %s15 = ssub.s32 %s9, 2
    %s16 = sadd.s32 %s9, 1
    %s17 = ssub.s32 %s9, %s16
    %p18 = scmp.eq.s32.totalorder %s17, 0
    %s20 = sadd.s32 %s19, 1
    %s21 = scalar_select %p18, %s19, %s20
    %p24 = pneg %p18
    %p25 = scmp.eq.s32.totalorder %s9, 2
    %p26 = por %p24, %p25
    %p27 = scmp.ne.s32.totalorder %s19, %s22
    %p28 = scmp.eq.s32.totalorder %s9, 0
    %p29 = por %p27, %p28
    %p30 = scmp.ne.s32.totalorder %s19, %s22
    %p31 = scmp.eq.s32.totalorder %s14, 2
    %p32 = por %p30, %p31
    %p33 = scmp.ne.s32.totalorder %s22, %s23
    %p34 = scmp.eq.s32.totalorder %s14, 0
    %p35 = por %p33, %p34
    %p36 = scmp.ne.s32.totalorder %s22, %s23
    %p37 = scmp.eq.s32.totalorder %s15, 2
    %p38 = por %p36, %p37
    %p40 = scmp.ne.s32.totalorder %s23, %s39
    %p41 = scmp.eq.s32.totalorder %s15, 0
    %p42 = por %p40, %p41
    %s44 = sadd.s32 %s43, 1
    %p47 = scmp.eq.s32.totalorder %s9, 2
    %p48 = scmp.ne.s32.totalorder %s43, %s45
    %p49 = scmp.eq.s32.totalorder %s9, 0
    %p50 = por %p48, %p49
    %p51 = scmp.ne.s32.totalorder %s43, %s45
    %p52 = scmp.eq.s32.totalorder %s14, 2
    %p53 = por %p51, %p52
    %p54 = scmp.ne.s32.totalorder %s45, %s46
    %p55 = scmp.eq.s32.totalorder %s14, 0
    %p56 = por %p54, %p55
    %p57 = scmp.ne.s32.totalorder %s45, %s46
    %p58 = scmp.eq.s32.totalorder %s15, 2
    %p59 = por %p57, %p58
    %p61 = scmp.ne.s32.totalorder %s46, %s60
    %p62 = scmp.eq.s32.totalorder %s15, 0
    %p63 = por %p61, %p62
    %s65 = sadd.s32 %s64, 1
    %p68 = scmp.eq.s32.totalorder %s9, 2
    %p69 = scmp.ne.s32.totalorder %s64, %s66
    %p70 = scmp.eq.s32.totalorder %s9, 0
    %p71 = por %p69, %p70
    %p72 = scmp.ne.s32.totalorder %s64, %s66
    %p73 = scmp.eq.s32.totalorder %s14, 2
    %p74 = por %p72, %p73
    %p75 = scmp.ne.s32.totalorder %s66, %s67
    %p76 = scmp.eq.s32.totalorder %s14, 0
    %p77 = por %p75, %p76
    %p78 = scmp.ne.s32.totalorder %s66, %s67
    %p79 = scmp.eq.s32.totalorder %s15, 2
    %p80 = por %p78, %p79
    %p82 = scmp.ne.s32.totalorder %s67, %s81
    %p83 = scmp.eq.s32.totalorder %s15, 0
    %p84 = por %p82, %p83
    %s85 = ssub.s32 %s9, %s16
    %p86 = scmp.eq.s32.totalorder %s85, 0
    %s88 = sadd.s32 %s87, 1
    %s89 = scalar_select %p86, %s87, %s88
    %p92 = pneg %p86
    %p93 = scmp.eq.s32.totalorder %s9, 2
    %p94 = por %p92, %p93
    %p95 = scmp.ne.s32.totalorder %s87, %s90
    %p96 = scmp.eq.s32.totalorder %s9, 0
    %p97 = por %p95, %p96
    %p98 = scmp.ne.s32.totalorder %s87, %s90
    %p99 = scmp.eq.s32.totalorder %s14, 2
    %p100 = por %p98, %p99
    %p101 = scmp.ne.s32.totalorder %s90, %s91
    %p102 = scmp.eq.s32.totalorder %s14, 0
    %p103 = por %p101, %p102
    %p104 = scmp.ne.s32.totalorder %s90, %s91
    %p105 = scmp.eq.s32.totalorder %s15, 2
    %p106 = por %p104, %p105
    %p108 = scmp.ne.s32.totalorder %s91, %s107
    %p109 = scmp.eq.s32.totalorder %s15, 0
    %p110 = por %p108, %p109
    %p111 = scmp.le.s32.totalorder 1, %s9
    %p112 = scmp.lt.s32.totalorder %s9, 4
    %p113 = pnand %p111, %p112
    %p114 = pneg %p113
    // Predicated region
    $region9: #{comp_graph_conv_forward.4} parent=5 // pred_check
      _
    $region10: #{comp_graph_conv_forward.4} parent=5 // pred_check_branch
      %116 = sbr.rel (%p113) target = $region12
    $region11: #{comp_graph_conv_forward.4} parent=5 // pred_region
      %s117 = ssub.s32 %s9, 1
      // Predicated region
      $region13: #{comp_graph_conv_forward.4} parent=11 // pred_check
        %p118 = pneg %p56
      $region14: #{comp_graph_conv_forward.4} parent=11 // pred_check_branch
        %120 = sbr.rel (%p118) target = $region16
      $region15: #{comp_graph_conv_forward.4} parent=11 // pred_region
        _
      $region16: #{comp_graph_conv_forward.4} parent=11 // pred_fallthru
        _
      // Predicated region
      $region17: #{comp_graph_conv_forward.4} parent=11 // pred_check
        %p121 = pneg %p77
      $region18: #{comp_graph_conv_forward.4} parent=11 // pred_check_branch
        %123 = sbr.rel (%p121) target = $region20
      $region19: #{comp_graph_conv_forward.4} parent=11 // pred_region
        _
      $region20: #{comp_graph_conv_forward.4} parent=11 // pred_fallthru
        _
    $region12: #{comp_graph_conv_forward.4} parent=5 // pred_fallthru
      _
    %p124 = scmp.lt.s32.totalorder %s9, 3
    // Predicated region
    $region21: #{comp_graph_conv_forward.4} parent=5 // pred_check
      %p125 = pneg %p124
    $region22: #{comp_graph_conv_forward.4} parent=5 // pred_check_branch
      %127 = sbr.rel (%p125) target = $region24
    $region23: #{comp_graph_conv_forward.4} parent=5 // pred_region
      // Predicated region
      $region25: #{comp_graph_conv_forward.4} parent=23 // pred_check
        %p128 = pneg %p29
      $region26: #{comp_graph_conv_forward.4} parent=23 // pred_check_branch
        %130 = sbr.rel (%p128) target = $region28
      $region27: #{comp_graph_conv_forward.4} parent=23 // pred_region
        %p131 = scmp.lt.s32.totalorder %s9, 2
        %s132 = scalar_select %p131, %s9, 2
        %s133 = smul.addr %s132, 8
        %s134 = scalar_lea.vmem %s0, %s133
      $region28: #{comp_graph_conv_forward.4} parent=23 // pred_fallthru
        _
    $region24: #{comp_graph_conv_forward.4} parent=5 // pred_fallthru
      _
    %p135 = scmp.le.s32.totalorder 1, %s9
    %p136 = scmp.lt.s32.totalorder %s9, 4
    %p137 = pnand %p135, %p136
    %p138 = pneg %p137
    // Predicated region
    $region29: #{comp_graph_conv_forward.4} parent=5 // pred_check
      _
    $region30: #{comp_graph_conv_forward.4} parent=5 // pred_check_branch
      %140 = sbr.rel (%p137) target = $region32
    $region31: #{comp_graph_conv_forward.4} parent=5 // pred_region
      %s141 = ssub.s32 %s9, 1
      %p142 = scmp.lt.s32.totalorder %s14, 2
      %s143 = scalar_select %p142, %s14, 2
      %s144 = smul.addr %s143, 8
      %s145 = scalar_lea.vmem %s0, %s144
      %p146 = pneg %p35
      %p147 = pneg %p32
      %p148 = pneg %p56
      %p149 = pneg %p53
      %p150 = pneg %p77
      %p151 = pneg %p74
      %p152 = pneg %p103
      %p153 = pneg %p100
      %p154 = scmp.lt.s32.totalorder %s14, 2
      %s155 = scalar_select %p154, %s14, 2
      %s156 = smul.addr %s155, 2
      %s157 = smul.addr %s156, 8
      %s158 = scalar_lea.vmem %s3, %s157
      %p159 = scmp.lt.s32.totalorder %s14, 2
      %s160 = scalar_select %p159, %s14, 2
      %s161 = smul.addr %s160, 8
      %s162 = scalar_lea.vmem %s0, %s161
      %p163 = scmp.lt.s32.totalorder %s14, 2
      %s164 = scalar_select %p163, %s14, 2
      %s165 = smul.addr %s164, 2
      %s166 = smul.addr %s165, 8
      %s167 = scalar_lea.vmem %s3, %s166
      %v168 = vld [vmem:[%s162] sm:$0xff]
      %v169 = vld [vmem:[%s1] sm:$0xff]
      %v170 = vld [vmem:[%s1 + $0x8] sm:$0xff]
      %v171 = vld [vmem:[%s1 + $0x10] sm:$0xff]
      %v172 = vld [vmem:[%s1 + $0x18] sm:$0xff]
      %v173 = vld [vmem:[%s1 + $0x20] sm:$0xff]
      %v174 = vld [vmem:[%s1 + $0x28] sm:$0xff]
      %v175 = vld [vmem:[%s1 + $0x30] sm:$0xff]
      %v176 = vld [vmem:[%s1 + $0x38] sm:$0xff]
      %v177 = vld [vmem:[%s2] sm:$0x3]
      %v179 = vperm.slane %v177, 0
      %v180 = vperm.slane %v177, 1
      %vm183 = vcmask 261120
      %v185 = vsel %vm183, %v168, 0
      %187 = vmatpush.msra.mxu0 0.0
      %188 = vmatpush.msra.mxu0 0.0
      %189 = vmatpush.msra.mxu0 0.0
      %190 = vmatpush.msra.mxu0 0.0
      %191 = vmatpush.msra.mxu0 0.0
      %192 = vmatpush.msra.mxu0 0.0
      %193 = vmatpush.msra.mxu0 0.0
      %194 = vmatpush.msra.mxu0 0.0
      %195 = vmatpush.msra.mxu0 0.0
      %196 = vmatpush.msra.mxu0 0.0
      %197 = vmatpush.msra.mxu0 0.0
      %198 = vmatpush.msra.mxu0 0.0
      %199 = vmatpush.msra.mxu0 %v175
      %200 = vmatpush.msra.mxu0 %v173
      %201 = vmatpush.msra.mxu0 %v171
      %202 = vmatpush.msra.mxu0 %v169
      %203 = vmatmul.f32.gmra.mxu0 %v185
      %v204 = vpop.f32.mrf.mxu0
      %v205 = vadd.f32 %v179, %v204
      %206 = vdwg.mxu0
      %207 = vmatpush.msra.mxu0 0.0
      %208 = vmatpush.msra.mxu0 0.0
      %209 = vmatpush.msra.mxu0 0.0
      %210 = vmatpush.msra.mxu0 0.0
      %211 = vmatpush.msra.mxu0 0.0
      %212 = vmatpush.msra.mxu0 0.0
      %213 = vmatpush.msra.mxu0 0.0
      %214 = vmatpush.msra.mxu0 0.0
      %215 = vmatpush.msra.mxu0 0.0
      %216 = vmatpush.msra.mxu0 0.0
      %217 = vmatpush.msra.mxu0 0.0
      %218 = vmatpush.msra.mxu0 0.0
      %219 = vmatpush.msra.mxu0 %v176
      %220 = vmatpush.msra.mxu0 %v174
      %221 = vmatpush.msra.mxu0 %v172
      %222 = vmatpush.msra.mxu0 %v170
      %223 = vmatmul.f32.gmra.mxu0 %v185
      %v224 = vpop.f32.mrf.mxu0
      %v225 = vadd.f32 %v180, %v224
      %226 = vdwg.mxu0
      %227 = vst [vmem:[%s167] sm:$0xff] %v205
      %228 = vst.msk [vmem:[%s167 + $0x8] sm:$0xff] %vm183, %v225
      %p229 = scmp.lt.s32.totalorder %s14, 2
      %s230 = scalar_select %p229, %s14, 2
      %s231 = smul.addr %s230, 2
      %s232 = smul.addr %s231, 8
      %s233 = scalar_lea.vmem %s3, %s232
      // Predicated region
      $region33: #{comp_graph_conv_forward.4} parent=31 // pred_check
        %p234 = pneg %p100
      $region34: #{comp_graph_conv_forward.4} parent=31 // pred_check_branch
        %236 = sbr.rel (%p234) target = $region36
      $region35: #{comp_graph_conv_forward.4} parent=31 // pred_region
        _
      $region36: #{comp_graph_conv_forward.4} parent=31 // pred_fallthru
        _
    $region32: #{comp_graph_conv_forward.4} parent=5 // pred_fallthru
      _
    %p237 = scmp.le.s32.totalorder 2, %s9
    // Predicated region
    $region37: #{comp_graph_conv_forward.4} parent=5 // pred_check
      %p238 = pneg %p237
    $region38: #{comp_graph_conv_forward.4} parent=5 // pred_check_branch
      %240 = sbr.rel (%p238) target = $region40
    $region39: #{comp_graph_conv_forward.4} parent=5 // pred_region
      %s241 = ssub.s32 %s9, 2
      // Predicated region
      $region41: #{comp_graph_conv_forward.4} parent=39 // pred_check
        %p242 = pneg %p106
      $region42: #{comp_graph_conv_forward.4} parent=39 // pred_check_branch
        %244 = sbr.rel (%p242) target = $region44
      $region43: #{comp_graph_conv_forward.4} parent=39 // pred_region
        %p245 = scmp.lt.s32.totalorder %s15, 2
        %s246 = scalar_select %p245, %s15, 2
        %s247 = smul.addr %s246, 2
        %s248 = smul.addr %s247, 8
        %s249 = scalar_lea.vmem %s3, %s248
      $region44: #{comp_graph_conv_forward.4} parent=39 // pred_fallthru
        _
    $region40: #{comp_graph_conv_forward.4} parent=5 // pred_fallthru
      _
  $region6: #{comp_graph_conv_forward.4} parent=0 // loop_footer
    %s13 = sadd.s32 1, %s9
  $region7: #{comp_graph_conv_forward.4} parent=0 // loop_footer_branch
    %8 = sbr.rel target = $region3
  $region8: #{comp_graph_conv_forward.4} parent=0 // loop_exit
    _

// kernel: comp_graph_conv_forward.7
$region0: #{comp_graph_conv_forward.7}
  #allocation0 [shape = 'u32[]', space=smem, size = 0x4, offset = 0x4, fixed_abs, tag = 'smem constant byte address 0x4 - core index']
  #allocation1 [shape = 'u32[72,128]{1,0:T(1,128)}', space=vmem, size = 0x9000, scoped, tag = 'internal scratch']
  %s0 = inlined_call_operand.vmem [shape: f32[7,32], index: 0, kind: input, shape index: {}]
  %s1 = inlined_call_operand.vmem [shape: f32[32,40], index: 1, kind: input, shape index: {}]
  %s2 = inlined_call_operand.vmem [shape: f32[1,40], index: 2, kind: input, shape index: {}]
  %s3 = inlined_call_operand.hbm [shape: f32[7,40], index: 3, kind: output, shape index: {}]
  %s4 = sld [smem:[#allocation0]]
  $region22: #{comp_graph_conv_forward.7} parent=0
    _
  %s6 = ssub.s32 1, %s4
  %s7 = scalar_select 0, %s6, %s4
  $region1: #{comp_graph_conv_forward.7} parent=0
    #allocation2 [shape = 'u8[4096]{0}', space=vmem, size = 0x1000, scoped, tag = 'output window, operand 0, single buffered']
    #allocation3 [shape = 's32[1]{0}', space=sflag, size = 0x4, scoped, tag = 'scoped memory for comp_graph_conv_forward.7']
    %8 = vsyncpa [#allocation3], 0
    // Predicated region
    $region2: #{comp_graph_conv_forward.7} parent=1 // pred_check
      _
    $region3: #{comp_graph_conv_forward.7} parent=1 // pred_check_branch
      %10 = sbr.rel (0) target = $region5
    $region4: #{comp_graph_conv_forward.7} parent=1 // pred_region
      _
    $region5: #{comp_graph_conv_forward.7} parent=1 // pred_fallthru
      _
    // Predicated region
    $region6: #{comp_graph_conv_forward.7} parent=1 // pred_check
      _
    $region7: #{comp_graph_conv_forward.7} parent=1 // pred_check_branch
      %12 = sbr.rel (0) target = $region9
    $region8: #{comp_graph_conv_forward.7} parent=1 // pred_region
      _
    $region9: #{comp_graph_conv_forward.7} parent=1 // pred_fallthru
      _
    // Predicated region
    $region10: #{comp_graph_conv_forward.7} parent=1 // pred_check
      _
    $region11: #{comp_graph_conv_forward.7} parent=1 // pred_check_branch
      %14 = sbr.rel (0) target = $region13
    $region12: #{comp_graph_conv_forward.7} parent=1 // pred_region
      _
    $region13: #{comp_graph_conv_forward.7} parent=1 // pred_fallthru
      _
    %v15 = vld [vmem:[%s0] sm:$0x7f]
    %v16 = vld [vmem:[%s1] sm:$0xff]
    %v17 = vld [vmem:[%s1 + $0x8] sm:$0xff]
    %v18 = vld [vmem:[%s1 + $0x10] sm:$0xff]
    %v19 = vld [vmem:[%s1 + $0x18] sm:$0xff]
    %v20 = vld [vmem:[%s2] sm:$0x1]
    %v22 = vperm.slane %v20, 0
    %vm24 = vcmask 261120
    %v26 = vsel %vm24, %v15, 0
    %28 = vmatpush.msra.mxu0 0.0
    %29 = vmatpush.msra.mxu0 0.0
    %30 = vmatpush.msra.mxu0 0.0
    %31 = vmatpush.msra.mxu0 0.0
    %32 = vmatpush.msra.mxu0 0.0
    %33 = vmatpush.msra.mxu0 0.0
    %34 = vmatpush.msra.mxu0 0.0
    %35 = vmatpush.msra.mxu0 0.0
    %36 = vmatpush.msra.mxu0 0.0
    %37 = vmatpush.msra.mxu0 0.0
    %38 = vmatpush.msra.mxu0 0.0
    %39 = vmatpush.msra.mxu0 0.0
    %40 = vmatpush.msra.mxu0 %v19
    %41 = vmatpush.msra.mxu0 %v18
    %42 = vmatpush.msra.mxu0 %v17
    %43 = vmatpush.msra.mxu0 %v16
    %44 = vmatmul.f32.gmra.mxu0 %v26
    %v45 = vpop.f32.mrf.mxu0
    %v46 = vadd.f32 %v22, %v45
    %47 = vdwg.mxu0
    %vm48 = vcmask 325632
    %49 = vst.msk [vmem:[#allocation2] sm:$0x7f] %vm48, %v46
    // Predicated region
    $region14: #{comp_graph_conv_forward.7} parent=1 // pred_check
      _
    $region15: #{comp_graph_conv_forward.7} parent=1 // pred_check_branch
      %51 = sbr.rel (0) target = $region17
    $region16: #{comp_graph_conv_forward.7} parent=1 // pred_region
      %53 = vsyncadd [#allocation3], 0
      %s55 = sshll.u32 [#allocation2], 4
      %s56 = int_to_ptr.vmem [resolvable:$true] %s55
      %s57 = sshll.u32 %s3, 4
      %s58 = int_to_ptr.hbm [resolvable:$true] %s57
      %60 = dma.vmem_to_hbm [thread:$0]  %s56, 128, %s58, [#allocation3]
    $region17: #{comp_graph_conv_forward.7} parent=1 // pred_fallthru
      _
    // Predicated region
    $region18: #{comp_graph_conv_forward.7} parent=1 // pred_check
      _
    $region19: #{comp_graph_conv_forward.7} parent=1 // pred_check_branch
      %62 = sbr.rel (0) target = $region21
    $region20: #{comp_graph_conv_forward.7} parent=1 // pred_region
      %64 = dma.done [#allocation3], 128
    $region21: #{comp_graph_conv_forward.7} parent=1 // pred_fallthru
      _
    %65 = vsyncpa [#allocation3], 1

// kernel: comp_graph_conv_forward.6
$region0: #{comp_graph_conv_forward.6}
  #allocation0 [shape = 'u32[]', space=smem, size = 0x4, offset = 0x4, fixed_abs, tag = 'smem constant byte address 0x4 - core index']
  #allocation1 [shape = 'u32[72,128]{1,0:T(1,128)}', space=vmem, size = 0x9000, scoped, tag = 'internal scratch']
  %s0 = inlined_call_operand.vmem [shape: f32[24,40], index: 0, kind: input, shape index: {}]
  %s1 = inlined_call_operand.vmem [shape: f32[1,40], index: 1, kind: input, shape index: {}]
  %s2 = inlined_call_operand.vmem [shape: f32[1,40], index: 2, kind: input, shape index: {}]
  %s3 = inlined_call_operand.hbm [shape: f32[24,40], index: 3, kind: output, shape index: {}]
  %s4 = sld [smem:[#allocation0]]
  $region22: #{comp_graph_conv_forward.6} parent=0
    _
  %s6 = ssub.s32 1, %s4
  %s7 = scalar_select 0, %s6, %s4
  $region1: #{comp_graph_conv_forward.6} parent=0
    #allocation2 [shape = 'u8[12288]{0}', space=vmem, size = 0x3000, scoped, tag = 'output window, operand 0, single buffered']
    #allocation3 [shape = 's32[1]{0}', space=sflag, size = 0x4, scoped, tag = 'scoped memory for comp_graph_conv_forward.6']
    %8 = vsyncpa [#allocation3], 0
    // Predicated region
    $region2: #{comp_graph_conv_forward.6} parent=1 // pred_check
      _
    $region3: #{comp_graph_conv_forward.6} parent=1 // pred_check_branch
      %10 = sbr.rel (0) target = $region5
    $region4: #{comp_graph_conv_forward.6} parent=1 // pred_region
      _
    $region5: #{comp_graph_conv_forward.6} parent=1 // pred_fallthru
      _
    // Predicated region
    $region6: #{comp_graph_conv_forward.6} parent=1 // pred_check
      _
    $region7: #{comp_graph_conv_forward.6} parent=1 // pred_check_branch
      %12 = sbr.rel (0) target = $region9
    $region8: #{comp_graph_conv_forward.6} parent=1 // pred_region
      _
    $region9: #{comp_graph_conv_forward.6} parent=1 // pred_fallthru
      _
    // Predicated region
    $region10: #{comp_graph_conv_forward.6} parent=1 // pred_check
      _
    $region11: #{comp_graph_conv_forward.6} parent=1 // pred_check_branch
      %14 = sbr.rel (0) target = $region13
    $region12: #{comp_graph_conv_forward.6} parent=1 // pred_region
      _
    $region13: #{comp_graph_conv_forward.6} parent=1 // pred_fallthru
      _
    %v15 = vld [vmem:[%s0] sm:$0xff]
    %v16 = vld [vmem:[%s0 + $0x8] sm:$0xff]
    %v17 = vld [vmem:[%s0 + $0x10] sm:$0xff]
    %vm18 = vcmask 326656
    %v19 = vsel %vm18, %v15, 0.0
    %v20 = vsel %vm18, %v16, 0.0
    %v21 = vadd.f32 %v19, %v20
    %v22 = vsel %vm18, %v17, 0.0
    %v23 = vadd.f32 %v21, %v22
    %v24 = vrot.slane %v23, 4
    %v25 = vadd.f32 %v23, %v24
    %v26 = vrot.slane %v25, 2
    %v27 = vadd.f32 %v25, %v26
    %v28 = vrot.slane %v27, 1
    %v29 = vadd.f32 %v27, %v28
    %v30 = vrcp.pop 24.0
    %v31 = vmul.f32 24.0, %v30
    %v32 = vsub.f32 1.0, %v31
    %v33 = vmul.f32 %v30, %v32
    %v34 = vadd.f32 %v30, %v33
    %vm35 = vweird.f32 %v30
    %v36 = vsel %vm35, %v30, %v34
    %v37 = vmul.f32 %v29, %v36
    %v38 = vsub.f32 %v15, %v37
    %v39 = vsub.f32 %v16, %v37
    %v40 = vsub.f32 %v17, %v37
    %v41 = vmul.f32 %v38, %v38
    %v42 = vmul.f32 %v39, %v39
    %v43 = vmul.f32 %v40, %v40
    %v44 = vsel %vm18, %v41, 0.0
    %v45 = vsel %vm18, %v42, 0.0
    %v46 = vadd.f32 %v44, %v45
    %v47 = vsel %vm18, %v43, 0.0
    %v48 = vadd.f32 %v46, %v47
    %v49 = vrot.slane %v48, 4
    %v50 = vadd.f32 %v48, %v49
    %v51 = vrot.slane %v50, 2
    %v52 = vadd.f32 %v50, %v51
    %v53 = vrot.slane %v52, 1
    %v54 = vadd.f32 %v52, %v53
    %v55 = vmul.f32 %v54, %v36
    %v56 = vadd.f32 %v55, 1e-05
    %v57 = vrsqrt.pop %v56
    %v58 = vmul.f32 %v57, %v56
    %v59 = vmul.f32 %v58, %v57
    %v60 = vmul.f32 0.5, %v59
    %v61 = vsub.f32 1.5, %v60
    %v62 = vmul.f32 %v57, %v61
    %vm63 = vweird.f32 %v56
    %vm64 = vweird.f32 %v57
    %vm65 = vmor %vm63, %vm64
    %v66 = vsel %vm65, %v57, %v62
    %v67 = vmul.f32 %v38, %v66
    %v68 = vmul.f32 %v39, %v66
    %v69 = vmul.f32 %v40, %v66
    %v70 = vld [vmem:[%s1] sm:$0x1]
    %v72 = vperm.slane %v70, 0
    %v74 = vmul.f32 %v67, %v72
    %v75 = vmul.f32 %v68, %v72
    %v76 = vmul.f32 %v69, %v72
    %v77 = vld [vmem:[%s2] sm:$0x1]
    %v79 = vperm.slane %v77, 0
    %v81 = vadd.f32 %v74, %v79
    %v82 = vadd.f32 %v75, %v79
    %v83 = vadd.f32 %v76, %v79
    %v84 = vtanh.pop %v81
    %v85 = vtanh.pop %v82
    %v86 = vtanh.pop %v83
    %87 = vst.msk [vmem:[#allocation2] sm:$0xff] %vm18, %v84
    %88 = vst.msk [vmem:[#allocation2 + $0x8] sm:$0xff] %vm18, %v85
    %89 = vst.msk [vmem:[#allocation2 + $0x10] sm:$0xff] %vm18, %v86
    // Predicated region
    $region14: #{comp_graph_conv_forward.6} parent=1 // pred_check
      _
    $region15: #{comp_graph_conv_forward.6} parent=1 // pred_check_branch
      %91 = sbr.rel (0) target = $region17
    $region16: #{comp_graph_conv_forward.6} parent=1 // pred_region
      %93 = vsyncadd [#allocation3], 0
      %s94 = sshll.u32 [#allocation2], 4
      %s95 = int_to_ptr.vmem [resolvable:$true] %s94
      %s96 = sshll.u32 %s3, 4
      %s97 = int_to_ptr.hbm [resolvable:$true] %s96
      %102 = dma.vmem_to_hbm [thread:$0]  %s95, 384, %s97, [#allocation3], 128, 128, 8
    $region17: #{comp_graph_conv_forward.6} parent=1 // pred_fallthru
      _
    // Predicated region
    $region18: #{comp_graph_conv_forward.6} parent=1 // pred_check
      _
    $region19: #{comp_graph_conv_forward.6} parent=1 // pred_check_branch
      %104 = sbr.rel (0) target = $region21
    $region20: #{comp_graph_conv_forward.6} parent=1 // pred_region
      %106 = dma.done [#allocation3], 384
    $region21: #{comp_graph_conv_forward.6} parent=1 // pred_fallthru
      _
    %107 = vsyncpa [#allocation3], 1

// kernel: comp_graph_conv_forward.5
$region0: #{comp_graph_conv_forward.5}
  #allocation0 [shape = 'u32[]', space=smem, size = 0x4, offset = 0x4, fixed_abs, tag = 'smem constant byte address 0x4 - core index']
  #allocation1 [shape = 'u32[72,128]{1,0:T(1,128)}', space=vmem, size = 0x9000, scoped, tag = 'internal scratch']
  #allocation2 [shape = 'f32[8,1]{1,0:T(8,128)}', space=vmem, size = 0x1000, scoped, tag = 'scratch operand']
  #allocation3 [shape = 'f32[8,1]{1,0:T(8,128)}', space=vmem, size = 0x1000, scoped, tag = 'scratch operand']
  #allocation4 [shape = 'f32[8,40]{1,0:T(8,128)}', space=vmem, size = 0x1000, scoped, tag = 'scratch operand']
  #allocation5 [shape = 'f32[1,1]{1,0:T(1,128)S(1)}', space=vmem, size = 0x200, scoped, tag = 'scoped memory for comp_graph_conv_forward.5']
  %s0 = inlined_call_operand.<no memory space> [shape: f32[1,1], index: 0, kind: input, shape index: {}]
  %s1 = inlined_call_operand.vmem [shape: f32[24,40], index: 1, kind: input, shape index: {}]
  %s2 = inlined_call_operand.vmem [shape: f32[24,40], index: 2, kind: input, shape index: {}]
  %s3 = inlined_call_operand.vmem [shape: f32[256,40], index: 3, kind: input, shape index: {}]
  %s4 = inlined_call_operand.vmem [shape: f32[256,40], index: 4, kind: input, shape index: {}]
  %s5 = inlined_call_operand.vmem [shape: s32[1,256], index: 5, kind: input, shape index: {}]
  %s6 = inlined_call_operand.vmem [shape: f32[24,40], index: 6, kind: output, shape index: {}]
  %s7 = sld [smem:[#allocation0]]
  $region65: #{comp_graph_conv_forward.5} parent=0
    _
  %s9 = ssub.s32 1, %s7
  %s10 = scalar_select 0, %s9, %s7
  %v11 = vstv %s0
  %12 = vst [vmem:[#allocation5] sm:$0x1] %v11
  loop: start=0, step=1, limit=8
  $region2: #{comp_graph_conv_forward.5} parent=0 // loop_pre_header
    _
  $region3: #{comp_graph_conv_forward.5} parent=0 // loop_header
    %s14 = sphi 0, %s18
    %p15 = scmp.ge.s32.totalorder %s14, 8
    %s21 = sphi 0, %s33
    %s22 = sphi 0, %s29
    %s23 = sphi 0, %s21
    %s24 = sphi 0, %s22
    %s25 = sphi 0, %s23
    %s26 = sphi 0, %s24
    %s34 = sphi 0, %s34
    %s36 = sphi 0, %s34
    %s37 = sphi 0, %s36
    %s51 = sphi 0, %s37
    %s57 = sphi 0, %s59
    %s60 = sphi 0, %s57
    %s61 = sphi 0, %s60
    %s77 = sphi 0, %s61
    %s83 = sphi 0, %s85
    %s86 = sphi 0, %s83
    %s87 = sphi 0, %s86
    %s103 = sphi 0, %s87
    %s109 = sphi 0, %s111
    %s112 = sphi 0, %s109
    %s113 = sphi 0, %s112
    %s129 = sphi 0, %s113
    %s135 = sphi 0, %s137
    %s138 = sphi 0, %s135
    %s139 = sphi 0, %s138
    %s155 = sphi 0, %s139
    %s161 = sphi 0, %s163
    %s164 = sphi 0, %s161
    %s165 = sphi 0, %s164
    %s181 = sphi 0, %s165
    %s187 = sphi 0, %s189
    %s190 = sphi 0, %s187
    %s191 = sphi 0, %s190
    %s207 = sphi 0, %s191
  $region4: #{comp_graph_conv_forward.5} parent=0 // loop_header_branch
    %17 = sbr.rel (%p15) target = $region8
  $region5: #{comp_graph_conv_forward.5} parent=0 // loop_body
    %s19 = ssub.s32 %s14, 1
    %s20 = ssub.s32 %s14, 2
    %s27 = sadd.s32 1, %s22
    %p28 = scmp.ge.s32.totalorder %s27, 2
    %s29 = scalar_select %p28, 0, %s27
    %s30 = sadd.s32 1, %s21
    %s31 = scalar_select %p28, %s30, %s21
    %p32 = scmp.ge.s32.totalorder %s31, 3
    %s33 = scalar_select %p32, 0, %s31
    %s35 = sadd.s32 %s34, 1
    %p38 = scmp.eq.s32.totalorder %s14, 5
    %p39 = scmp.ne.s32.totalorder %s34, %s36
    %p40 = scmp.eq.s32.totalorder %s14, 0
    %p41 = por %p39, %p40
    %p42 = scmp.ne.s32.totalorder %s34, %s36
    %p43 = scmp.eq.s32.totalorder %s19, 5
    %p44 = por %p42, %p43
    %p45 = scmp.ne.s32.totalorder %s36, %s37
    %p46 = scmp.eq.s32.totalorder %s19, 0
    %p47 = por %p45, %p46
    %p48 = scmp.ne.s32.totalorder %s36, %s37
    %p49 = scmp.eq.s32.totalorder %s20, 5
    %p50 = por %p48, %p49
    %p52 = scmp.ne.s32.totalorder %s37, %s51
    %p53 = scmp.eq.s32.totalorder %s20, 0
    %p54 = por %p52, %p53
    %s55 = ssub.s32 %s21, %s33
    %p56 = scmp.eq.s32.totalorder %s55, 0
    %s58 = sadd.s32 %s57, 1
    %s59 = scalar_select %p56, %s57, %s58
    %p62 = pneg %p56
    %p63 = scmp.eq.s32.totalorder %s14, 5
    %p64 = por %p62, %p63
    %p65 = scmp.ne.s32.totalorder %s57, %s60
    %p66 = scmp.eq.s32.totalorder %s14, 0
    %p67 = por %p65, %p66
    %p68 = scmp.ne.s32.totalorder %s57, %s60
    %p69 = scmp.eq.s32.totalorder %s19, 5
    %p70 = por %p68, %p69
    %p71 = scmp.ne.s32.totalorder %s60, %s61
    %p72 = scmp.eq.s32.totalorder %s19, 0
    %p73 = por %p71, %p72
    %p74 = scmp.ne.s32.totalorder %s60, %s61
    %p75 = scmp.eq.s32.totalorder %s20, 5
    %p76 = por %p74, %p75
    %p78 = scmp.ne.s32.totalorder %s61, %s77
    %p79 = scmp.eq.s32.totalorder %s20, 0
    %p80 = por %p78, %p79
    %s81 = ssub.s32 %s21, %s33
    %p82 = scmp.eq.s32.totalorder %s81, 0
    %s84 = sadd.s32 %s83, 1
    %s85 = scalar_select %p82, %s83, %s84
    %p88 = pneg %p82
    %p89 = scmp.eq.s32.totalorder %s14, 5
    %p90 = por %p88, %p89
    %p91 = scmp.ne.s32.totalorder %s83, %s86
    %p92 = scmp.eq.s32.totalorder %s14, 0
    %p93 = por %p91, %p92
    %p94 = scmp.ne.s32.totalorder %s83, %s86
    %p95 = scmp.eq.s32.totalorder %s19, 5
    %p96 = por %p94, %p95
    %p97 = scmp.ne.s32.totalorder %s86, %s87
    %p98 = scmp.eq.s32.totalorder %s19, 0
    %p99 = por %p97, %p98
    %p100 = scmp.ne.s32.totalorder %s86, %s87
    %p101 = scmp.eq.s32.totalorder %s20, 5
    %p102 = por %p100, %p101
    %p104 = scmp.ne.s32.totalorder %s87, %s103
    %p105 = scmp.eq.s32.totalorder %s20, 0
    %p106 = por %p104, %p105
    %s107 = ssub.s32 %s22, %s29
    %p108 = scmp.eq.s32.totalorder %s107, 0
    %s110 = sadd.s32 %s109, 1
    %s111 = scalar_select %p108, %s109, %s110
    %p114 = pneg %p108
    %p115 = scmp.eq.s32.totalorder %s14, 5
    %p116 = por %p114, %p115
    %p117 = scmp.ne.s32.totalorder %s109, %s112
    %p118 = scmp.eq.s32.totalorder %s14, 0
    %p119 = por %p117, %p118
    %p120 = scmp.ne.s32.totalorder %s109, %s112
    %p121 = scmp.eq.s32.totalorder %s19, 5
    %p122 = por %p120, %p121
    %p123 = scmp.ne.s32.totalorder %s112, %s113
    %p124 = scmp.eq.s32.totalorder %s19, 0
    %p125 = por %p123, %p124
    %p126 = scmp.ne.s32.totalorder %s112, %s113
    %p127 = scmp.eq.s32.totalorder %s20, 5
    %p128 = por %p126, %p127
    %p130 = scmp.ne.s32.totalorder %s113, %s129
    %p131 = scmp.eq.s32.totalorder %s20, 0
    %p132 = por %p130, %p131
    %s133 = ssub.s32 %s22, %s29
    %p134 = scmp.eq.s32.totalorder %s133, 0
    %s136 = sadd.s32 %s135, 1
    %s137 = scalar_select %p134, %s135, %s136
    %p140 = pneg %p134
    %p141 = scmp.eq.s32.totalorder %s14, 5
    %p142 = por %p140, %p141
    %p143 = scmp.ne.s32.totalorder %s135, %s138
    %p144 = scmp.eq.s32.totalorder %s14, 0
    %p145 = por %p143, %p144
    %p146 = scmp.ne.s32.totalorder %s135, %s138
    %p147 = scmp.eq.s32.totalorder %s19, 5
    %p148 = por %p146, %p147
    %p149 = scmp.ne.s32.totalorder %s138, %s139
    %p150 = scmp.eq.s32.totalorder %s19, 0
    %p151 = por %p149, %p150
    %p152 = scmp.ne.s32.totalorder %s138, %s139
    %p153 = scmp.eq.s32.totalorder %s20, 5
    %p154 = por %p152, %p153
    %p156 = scmp.ne.s32.totalorder %s139, %s155
    %p157 = scmp.eq.s32.totalorder %s20, 0
    %p158 = por %p156, %p157
    %s159 = ssub.s32 %s22, %s29
    %p160 = scmp.eq.s32.totalorder %s159, 0
    %s162 = sadd.s32 %s161, 1
    %s163 = scalar_select %p160, %s161, %s162
    %p166 = pneg %p160
    %p167 = scmp.eq.s32.totalorder %s14, 5
    %p168 = por %p166, %p167
    %p169 = scmp.ne.s32.totalorder %s161, %s164
    %p170 = scmp.eq.s32.totalorder %s14, 0
    %p171 = por %p169, %p170
    %p172 = scmp.ne.s32.totalorder %s161, %s164
    %p173 = scmp.eq.s32.totalorder %s19, 5
    %p174 = por %p172, %p173
    %p175 = scmp.ne.s32.totalorder %s164, %s165
    %p176 = scmp.eq.s32.totalorder %s19, 0
    %p177 = por %p175, %p176
    %p178 = scmp.ne.s32.totalorder %s164, %s165
    %p179 = scmp.eq.s32.totalorder %s20, 5
    %p180 = por %p178, %p179
    %p182 = scmp.ne.s32.totalorder %s165, %s181
    %p183 = scmp.eq.s32.totalorder %s20, 0
    %p184 = por %p182, %p183
    %s185 = ssub.s32 %s21, %s33
    %p186 = scmp.eq.s32.totalorder %s185, 0
    %s188 = sadd.s32 %s187, 1
    %s189 = scalar_select %p186, %s187, %s188
    %p192 = pneg %p186
    %p193 = scmp.eq.s32.totalorder %s14, 5
    %p194 = por %p192, %p193
    %p195 = scmp.ne.s32.totalorder %s187, %s190
    %p196 = scmp.eq.s32.totalorder %s14, 0
    %p197 = por %p195, %p196
    %p198 = scmp.ne.s32.totalorder %s187, %s190
    %p199 = scmp.eq.s32.totalorder %s19, 5
    %p200 = por %p198, %p199
    %p201 = scmp.ne.s32.totalorder %s190, %s191
    %p202 = scmp.eq.s32.totalorder %s19, 0
    %p203 = por %p201, %p202
    %p204 = scmp.ne.s32.totalorder %s190, %s191
    %p205 = scmp.eq.s32.totalorder %s20, 5
    %p206 = por %p204, %p205
    %p208 = scmp.ne.s32.totalorder %s191, %s207
    %p209 = scmp.eq.s32.totalorder %s20, 0
    %p210 = por %p208, %p209
    %p211 = scmp.le.s32.totalorder 1, %s14
    %p212 = scmp.lt.s32.totalorder %s14, 7
    %p213 = pnand %p211, %p212
    %p214 = pneg %p213
    // Predicated region
    $region9: #{comp_graph_conv_forward.5} parent=5 // pred_check
      _
    $region10: #{comp_graph_conv_forward.5} parent=5 // pred_check_branch
      %216 = sbr.rel (%p213) target = $region12
    $region11: #{comp_graph_conv_forward.5} parent=5 // pred_region
      %s217 = ssub.s32 %s14, 1
      // Predicated region
      $region13: #{comp_graph_conv_forward.5} parent=11 // pred_check
        %p218 = pneg %p47
      $region14: #{comp_graph_conv_forward.5} parent=11 // pred_check_branch
        %220 = sbr.rel (%p218) target = $region16
      $region15: #{comp_graph_conv_forward.5} parent=11 // pred_region
        _
      $region16: #{comp_graph_conv_forward.5} parent=11 // pred_fallthru
        _
    $region12: #{comp_graph_conv_forward.5} parent=5 // pred_fallthru
      _
    %p221 = scmp.lt.s32.totalorder %s14, 6
    // Predicated region
    $region17: #{comp_graph_conv_forward.5} parent=5 // pred_check
      %p222 = pneg %p221
    $region18: #{comp_graph_conv_forward.5} parent=5 // pred_check_branch
      %224 = sbr.rel (%p222) target = $region20
    $region19: #{comp_graph_conv_forward.5} parent=5 // pred_region
      // Predicated region
      $region21: #{comp_graph_conv_forward.5} parent=19 // pred_check
        %p225 = pneg %p67
      $region22: #{comp_graph_conv_forward.5} parent=19 // pred_check_branch
        %227 = sbr.rel (%p225) target = $region24
      $region23: #{comp_graph_conv_forward.5} parent=19 // pred_region
        %p228 = scmp.lt.s32.totalorder %s21, 2
        %s229 = scalar_select %p228, %s21, 2
        %s230 = smul.addr %s229, 8
        %s231 = scalar_lea.vmem %s1, %s230
      $region24: #{comp_graph_conv_forward.5} parent=19 // pred_fallthru
        _
      // Predicated region
      $region25: #{comp_graph_conv_forward.5} parent=19 // pred_check
        %p232 = pneg %p93
      $region26: #{comp_graph_conv_forward.5} parent=19 // pred_check_branch
        %234 = sbr.rel (%p232) target = $region28
      $region27: #{comp_graph_conv_forward.5} parent=19 // pred_region
        %p235 = scmp.lt.s32.totalorder %s21, 2
        %s236 = scalar_select %p235, %s21, 2
        %s237 = smul.addr %s236, 8
        %s238 = scalar_lea.vmem %s2, %s237
      $region28: #{comp_graph_conv_forward.5} parent=19 // pred_fallthru
        _
      // Predicated region
      $region29: #{comp_graph_conv_forward.5} parent=19 // pred_check
        %p239 = pneg %p119
      $region30: #{comp_graph_conv_forward.5} parent=19 // pred_check_branch
        %241 = sbr.rel (%p239) target = $region32
      $region31: #{comp_graph_conv_forward.5} parent=19 // pred_region
        %s242 = smul.u32 16, %s22
        %p243 = scmp.lt.s32.totalorder %s242, 31
        %s244 = scalar_select %p243, %s242, 31
        %s245 = smul.addr %s244, 8
        %s246 = scalar_lea.vmem %s3, %s245
        %s247 = smul.u32 16, %s22
      $region32: #{comp_graph_conv_forward.5} parent=19 // pred_fallthru
        _
      // Predicated region
      $region33: #{comp_graph_conv_forward.5} parent=19 // pred_check
        %p248 = pneg %p145
      $region34: #{comp_graph_conv_forward.5} parent=19 // pred_check_branch
        %250 = sbr.rel (%p248) target = $region36
      $region35: #{comp_graph_conv_forward.5} parent=19 // pred_region
        %s251 = smul.u32 16, %s22
        %p252 = scmp.lt.s32.totalorder %s251, 31
        %s253 = scalar_select %p252, %s251, 31
        %s254 = smul.addr %s253, 8
        %s255 = scalar_lea.vmem %s4, %s254
        %s256 = smul.u32 16, %s22
      $region36: #{comp_graph_conv_forward.5} parent=19 // pred_fallthru
        _
      // Predicated region
      $region37: #{comp_graph_conv_forward.5} parent=19 // pred_check
        %p257 = pneg %p171
      $region38: #{comp_graph_conv_forward.5} parent=19 // pred_check_branch
        %259 = sbr.rel (%p257) target = $region40
      $region39: #{comp_graph_conv_forward.5} parent=19 // pred_region
        %p260 = scmp.lt.s32.totalorder %s22, 1
        %s261 = scalar_select %p260, %s22, 1
        %s262 = scalar_lea.vmem %s5, %s261
      $region40: #{comp_graph_conv_forward.5} parent=19 // pred_fallthru
        _
    $region20: #{comp_graph_conv_forward.5} parent=5 // pred_fallthru
      _
    %p263 = scmp.le.s32.totalorder 1, %s14
    %p264 = scmp.lt.s32.totalorder %s14, 7
    %p265 = pnand %p263, %p264
    %p266 = pneg %p265
    // Predicated region
    $region41: #{comp_graph_conv_forward.5} parent=5 // pred_check
      _
    $region42: #{comp_graph_conv_forward.5} parent=5 // pred_check_branch
      %268 = sbr.rel (%p265) target = $region44
    $region43: #{comp_graph_conv_forward.5} parent=5 // pred_region
      %s269 = ssub.s32 %s14, 1
      %p270 = pneg %p47
      %p271 = pneg %p44
      %p272 = scmp.lt.s32.totalorder %s23, 2
      %s273 = scalar_select %p272, %s23, 2
      %s274 = smul.addr %s273, 8
      %s275 = scalar_lea.vmem %s1, %s274
      %p276 = pneg %p73
      %p277 = pneg %p70
      %p278 = scmp.lt.s32.totalorder %s23, 2
      %s279 = scalar_select %p278, %s23, 2
      %s280 = smul.addr %s279, 8
      %s281 = scalar_lea.vmem %s2, %s280
      %p282 = pneg %p99
      %p283 = pneg %p96
      %s284 = smul.u32 16, %s24
      %p285 = scmp.lt.s32.totalorder %s284, 31
      %s286 = scalar_select %p285, %s284, 31
      %s287 = smul.addr %s286, 8
      %s288 = scalar_lea.vmem %s3, %s287
      %p289 = pneg %p125
      %p290 = pneg %p122
      %s291 = smul.u32 16, %s24
      %p292 = scmp.lt.s32.totalorder %s291, 31
      %s293 = scalar_select %p292, %s291, 31
      %s294 = smul.addr %s293, 8
      %s295 = scalar_lea.vmem %s4, %s294
      %p296 = pneg %p151
      %p297 = pneg %p148
      %p298 = scmp.lt.s32.totalorder %s24, 1
      %s299 = scalar_select %p298, %s24, 1
      %s300 = scalar_lea.vmem %s5, %s299
      %p301 = pneg %p177
      %p302 = pneg %p174
      %p303 = pneg %p203
      %p304 = pneg %p200
      %p305 = scmp.lt.s32.totalorder %s23, 2
      %s306 = scalar_select %p305, %s23, 2
      %s307 = smul.addr %s306, 8
      %s308 = scalar_lea.vmem %s6, %s307
      %p309 = scmp.lt.s32.totalorder %s23, 2
      %s310 = scalar_select %p309, %s23, 2
      %s311 = smul.addr %s310, 8
      %s312 = scalar_lea.vmem %s1, %s311
      %p313 = scmp.lt.s32.totalorder %s23, 2
      %s314 = scalar_select %p313, %s23, 2
      %s315 = smul.addr %s314, 8
      %s316 = scalar_lea.vmem %s2, %s315
      %s317 = smul.u32 16, %s24
      %p318 = scmp.lt.s32.totalorder %s317, 31
      %s319 = scalar_select %p318, %s317, 31
      %s320 = smul.addr %s319, 8
      %s321 = scalar_lea.vmem %s3, %s320
      %s322 = smul.u32 16, %s24
      %s323 = smul.u32 16, %s24
      %p324 = scmp.lt.s32.totalorder %s323, 31
      %s325 = scalar_select %p324, %s323, 31
      %s326 = smul.addr %s325, 8
      %s327 = scalar_lea.vmem %s4, %s326
      %s328 = smul.u32 16, %s24
      %p329 = scmp.lt.s32.totalorder %s24, 1
      %s330 = scalar_select %p329, %s24, 1
      %s331 = scalar_lea.vmem %s5, %s330
      %p332 = scmp.lt.s32.totalorder %s23, 2
      %s333 = scalar_select %p332, %s23, 2
      %s334 = smul.addr %s333, 8
      %s335 = scalar_lea.vmem %s6, %s334
      %p336 = scmp.eq.s32.totalorder %s24, 0
      // Predicated region
      $region45: #{comp_graph_conv_forward.5} parent=43 // pred_check
        %p337 = pneg %p336
      $region46: #{comp_graph_conv_forward.5} parent=43 // pred_check_branch
        %339 = sbr.rel (%p337) target = $region48
      $region47: #{comp_graph_conv_forward.5} parent=43 // pred_region
        %vm340 = vcmask 7168
        %341 = vst.msk [vmem:[#allocation2] sm:$0xff] %vm340, -1e+30
        %342 = vst.msk [vmem:[#allocation3] sm:$0xff] %vm340, 0.0
        %vm343 = vcmask 326656
        %344 = vst.msk [vmem:[#allocation4] sm:$0xff] %vm343, 0.0
      $region48: #{comp_graph_conv_forward.5} parent=43 // pred_fallthru
        _
      %v345 = vld [vmem:[%s312] sm:$0xff]
      %v346 = vld [vmem:[%s321] sm:$0xff]
      %v347 = vld [vmem:[%s321 + $0x8] sm:$0xff]
      %v348 = vld [vmem:[%s321 + $0x10] sm:$0xff]
      %v349 = vld [vmem:[%s321 + $0x18] sm:$0xff]
      %v350 = vld [vmem:[%s321 + $0x20] sm:$0xff]
      %v351 = vld [vmem:[%s321 + $0x28] sm:$0xff]
      %v352 = vld [vmem:[%s321 + $0x30] sm:$0xff]
      %v353 = vld [vmem:[%s321 + $0x38] sm:$0xff]
      %v354 = vld [vmem:[%s321 + $0x40] sm:$0xff]
      %v355 = vld [vmem:[%s321 + $0x48] sm:$0xff]
      %v356 = vld [vmem:[%s321 + $0x50] sm:$0xff]
      %v357 = vld [vmem:[%s321 + $0x58] sm:$0xff]
      %v358 = vld [vmem:[%s321 + $0x60] sm:$0xff]
      %v359 = vld [vmem:[%s321 + $0x68] sm:$0xff]
      %v360 = vld [vmem:[%s321 + $0x70] sm:$0xff]
      %v361 = vld [vmem:[%s321 + $0x78] sm:$0xff]
      %vm362 = vcmask 326656
      %v364 = vsel %vm362, %v345, 0
      %v367 = vsel %vm362, %v346, 0
      %v370 = vsel %vm362, %v347, 0
      %v373 = vsel %vm362, %v348, 0
      %v376 = vsel %vm362, %v349, 0
      %v379 = vsel %vm362, %v350, 0
      %v382 = vsel %vm362, %v351, 0
      %v385 = vsel %vm362, %v352, 0
      %v388 = vsel %vm362, %v353, 0
      %v391 = vsel %vm362, %v354, 0
      %v394 = vsel %vm362, %v355, 0
      %v397 = vsel %vm362, %v356, 0
      %v400 = vsel %vm362, %v357, 0
      %v403 = vsel %vm362, %v358, 0
      %v406 = vsel %vm362, %v359, 0
      %v409 = vsel %vm362, %v360, 0
      %v412 = vsel %vm362, %v361, 0
      %414 = vmatpush.xpose.msra.mxu0 %v412
      %415 = vmatpush.xpose.msra.mxu0 %v409
      %416 = vmatpush.xpose.msra.mxu0 %v406
      %417 = vmatpush.xpose.msra.mxu0 %v403
      %418 = vmatpush.xpose.msra.mxu0 %v400
      %419 = vmatpush.xpose.msra.mxu0 %v397
      %420 = vmatpush.xpose.msra.mxu0 %v394
      %421 = vmatpush.xpose.msra.mxu0 %v391
      %422 = vmatpush.xpose.msra.mxu0 %v388
      %423 = vmatpush.xpose.msra.mxu0 %v385
      %424 = vmatpush.xpose.msra.mxu0 %v382
      %425 = vmatpush.xpose.msra.mxu0 %v379
      %426 = vmatpush.xpose.msra.mxu0 %v376
      %427 = vmatpush.xpose.msra.mxu0 %v373
      %428 = vmatpush.xpose.msra.mxu0 %v370
      %429 = vmatpush.xpose.msra.mxu0 %v367
      %430 = vmatmul.f32.gmra.mxu0 %v364
      %v431 = vpop.f32.mrf.mxu0
      %v432 = vadd.f32 0.0, %v431
      %433 = vdwg.mxu0
      %v434 = vlaneseq
      %v435 = vshrl.u32 %v434, 7
      %s436 = smul.u32 %s23, 8
      %v437 = vstv %s436
      %v438 = vadd.s32 %v435, %v437
      %v439 = vld [vmem:[%s331] sm:$0x1]
      %v440 = vperm.slane %v439, 0
      %vm441 = vcmp.eq.s32.totalorder %v440, %v438
      %v442 = vsel %vm441, %v432, -1e+30
      %v443 = vld [vmem:[#allocation2] sm:$0xff]
      %444 = vmax.xlane.f32.xlu0 %v442
      %v445 = vpop.xlane.xlu0 %444
      %v446 = vmax.f32 %v443, %v445
      %v447 = vsub.f32 %v443, %v446
      %v448 = vmul.f32 %v447, 1.442695
      %v449 = vpow.pop %v448
      %451 = vset.pattern.permute.xlu0 0
      %452 = vperm.xlu0 %451, %v446
      %v453 = vpop.permute.xlu0 %452
      %v455 = vsub.f32 %v442, %v453
      %v456 = vmul.f32 %v455, 1.442695
      %v457 = vpow.pop %v456
      %v458 = vld [vmem:[#allocation3] sm:$0xff]
      %v459 = vmul.f32 %v449, %v458
      %460 = vadd.xlane.f32.xlu0 %v457
      %v461 = vpop.xlane.xlu0 %460
      %v462 = vadd.f32 %v459, %v461
      %vm463 = vcmask 7168
      %464 = vst.msk [vmem:[#allocation3] sm:$0xff] %vm463, %v462
      %v465 = vld [vmem:[#allocation4] sm:$0xff]
      %467 = vset.pattern.permute.xlu0 0
      %468 = vperm.xlu0 %467, %v449
      %v469 = vpop.permute.xlu0 %468
      %v471 = vmul.f32 %v469, %v465
      %v472 = vld [vmem:[%s327] sm:$0xff]
      %v473 = vld [vmem:[%s327 + $0x8] sm:$0xff]
      %v474 = vld [vmem:[%s327 + $0x10] sm:$0xff]
      %v475 = vld [vmem:[%s327 + $0x18] sm:$0xff]
      %v476 = vld [vmem:[%s327 + $0x20] sm:$0xff]
      %v477 = vld [vmem:[%s327 + $0x28] sm:$0xff]
      %v478 = vld [vmem:[%s327 + $0x30] sm:$0xff]
      %v479 = vld [vmem:[%s327 + $0x38] sm:$0xff]
      %v480 = vld [vmem:[%s327 + $0x40] sm:$0xff]
      %v481 = vld [vmem:[%s327 + $0x48] sm:$0xff]
      %v482 = vld [vmem:[%s327 + $0x50] sm:$0xff]
      %v483 = vld [vmem:[%s327 + $0x58] sm:$0xff]
      %v484 = vld [vmem:[%s327 + $0x60] sm:$0xff]
      %v485 = vld [vmem:[%s327 + $0x68] sm:$0xff]
      %v486 = vld [vmem:[%s327 + $0x70] sm:$0xff]
      %v487 = vld [vmem:[%s327 + $0x78] sm:$0xff]
      %488 = vmatpush.msra.mxu0 %v487
      %489 = vmatpush.msra.mxu0 %v486
      %490 = vmatpush.msra.mxu0 %v485
      %491 = vmatpush.msra.mxu0 %v484
      %492 = vmatpush.msra.mxu0 %v483
      %493 = vmatpush.msra.mxu0 %v482
      %494 = vmatpush.msra.mxu0 %v481
      %495 = vmatpush.msra.mxu0 %v480
      %496 = vmatpush.msra.mxu0 %v479
      %497 = vmatpush.msra.mxu0 %v478
      %498 = vmatpush.msra.mxu0 %v477
      %499 = vmatpush.msra.mxu0 %v476
      %500 = vmatpush.msra.mxu0 %v475
      %501 = vmatpush.msra.mxu0 %v474
      %502 = vmatpush.msra.mxu0 %v473
      %503 = vmatpush.msra.mxu0 %v472
      %504 = vmatmul.f32.gmra.mxu0 %v457
      %v505 = vpop.f32.mrf.mxu0
      %v506 = vadd.f32 0.0, %v505
      %507 = vdwg.mxu0
      %v508 = vadd.f32 %v471, %v506
      %509 = vst.msk [vmem:[#allocation4] sm:$0xff] %vm362, %v508
      %510 = vst.msk [vmem:[#allocation2] sm:$0xff] %vm463, %v446
      %p511 = scmp.eq.s32.totalorder %s24, 1
      // Predicated region
      $region49: #{comp_graph_conv_forward.5} parent=43 // pred_check
        %p512 = pneg %p511
      $region50: #{comp_graph_conv_forward.5} parent=43 // pred_check_branch
        %514 = sbr.rel (%p512) target = $region52
      $region51: #{comp_graph_conv_forward.5} parent=43 // pred_region
        %v515 = vld [vmem:[#allocation4] sm:$0xff]
        %v516 = vld [vmem:[#allocation3] sm:$0xff]
        %v517 = vrcp.pop %v516
        %519 = vset.pattern.permute.xlu0 0
        %520 = vperm.xlu0 %519, %v517
        %v521 = vpop.permute.xlu0 %520
        %v523 = vmul.f32 %v515, %v521
        %v524 = vld [vmem:[#allocation5] sm:$0x1]
        %v525 = vxor.u32 %v524, 2147483648
        %v526 = vmul.f32 %v525, 1.442695
        %v527 = vpow.pop %v526
        %v528 = vadd.f32 %v527, 1.0
        %v529 = vrcp.pop %v528
        %v530 = vmul.f32 %v528, %v529
        %v531 = vsub.f32 1.0, %v530
        %v532 = vmul.f32 %v529, %v531
        %v533 = vadd.f32 %v529, %v532
        %vm534 = vweird.f32 %v528
        %vm535 = vweird.f32 %v529
        %vm536 = vmor %vm534, %vm535
        %v537 = vsel %vm536, %v529, %v533
        %v538 = vand.u32 2147483647, %v528
        %vm539 = vcmp.eq.f32.partialorder %v538, 8.507059e+37
        %v540 = vand.u32 %v528, 2147483648
        %v541 = vor.u32 1.1754944e-38, %v540
        %v542 = vsel %vm539, %v541, %v537
        %v543 = vmul.f32 1.0, %v542
        %v544 = vld [vmem:[%s316] sm:$0xff]
        %v546 = vperm.slane %v543, 0
        %547 = vset.pattern.permute.xlu0 0
        %548 = vperm.xlu0 %547, %v546
        %v549 = vpop.permute.xlu0 %548
        %v551 = vmul.f32 %v549, %v544
        %v552 = vsub.f32 1.0, %v543
        %v554 = vperm.slane %v552, 0
        %555 = vset.pattern.permute.xlu0 0
        %556 = vperm.xlu0 %555, %v554
        %v557 = vpop.permute.xlu0 %556
        %v559 = vmul.f32 %v557, %v523
        %v560 = vadd.f32 %v551, %v559
        %561 = vst.msk [vmem:[%s335] sm:$0xff] %vm362, %v560
      $region52: #{comp_graph_conv_forward.5} parent=43 // pred_fallthru
        _
      %p562 = scmp.lt.s32.totalorder %s23, 2
      %s563 = scalar_select %p562, %s23, 2
      %s564 = smul.addr %s563, 8
      %s565 = scalar_lea.vmem %s6, %s564
      // Predicated region
      $region53: #{comp_graph_conv_forward.5} parent=43 // pred_check
        %p566 = pneg %p200
      $region54: #{comp_graph_conv_forward.5} parent=43 // pred_check_branch
        %568 = sbr.rel (%p566) target = $region56
      $region55: #{comp_graph_conv_forward.5} parent=43 // pred_region
        _
      $region56: #{comp_graph_conv_forward.5} parent=43 // pred_fallthru
        _
    $region44: #{comp_graph_conv_forward.5} parent=5 // pred_fallthru
      _
    %p569 = scmp.le.s32.totalorder 2, %s14
    // Predicated region
    $region57: #{comp_graph_conv_forward.5} parent=5 // pred_check
      %p570 = pneg %p569
    $region58: #{comp_graph_conv_forward.5} parent=5 // pred_check_branch
      %572 = sbr.rel (%p570) target = $region60
    $region59: #{comp_graph_conv_forward.5} parent=5 // pred_region
      %s573 = ssub.s32 %s14, 2
      // Predicated region
      $region61: #{comp_graph_conv_forward.5} parent=59 // pred_check
        %p574 = pneg %p206
      $region62: #{comp_graph_conv_forward.5} parent=59 // pred_check_branch
        %576 = sbr.rel (%p574) target = $region64
      $region63: #{comp_graph_conv_forward.5} parent=59 // pred_region
        %p577 = scmp.lt.s32.totalorder %s25, 2
        %s578 = scalar_select %p577, %s25, 2
        %s579 = smul.addr %s578, 8
        %s580 = scalar_lea.vmem %s6, %s579
      $region64: #{comp_graph_conv_forward.5} parent=59 // pred_fallthru
        _
    $region60: #{comp_graph_conv_forward.5} parent=5 // pred_fallthru
      _
  $region6: #{comp_graph_conv_forward.5} parent=0 // loop_footer
    %s18 = sadd.s32 1, %s14
  $region7: #{comp_graph_conv_forward.5} parent=0 // loop_footer_branch
    %13 = sbr.rel target = $region3
  $region8: #{comp_graph_conv_forward.5} parent=0 // loop_exit
    _

</llo_original>
